<compile_context>
chip_gen: v7x
topology: tpu7x:2x2x1
jax: 0.10.0
libtpu: 0.0.40
codegen_flags: <defaults>
</compile_context>

<pallas_src>
import jax
import jax.numpy as jnp
from jax.experimental import pallas as pl
from jax.experimental.pallas import tpu as pltpu

FEATURES = 4096


# ----------------------------------------------------------------------------
# Kernel 1: fused component feature extraction + head reductions.
#   grid = (F_tiles [parallel], K_tiles [arbitrary])
#   outputs, per F-tile j: per-row feature max and partial fc logit (both (3N, 1)).
# ----------------------------------------------------------------------------
def _feat_stats_kernel(x_ref, w_ref, fcw_ref, max_ref, logit_ref, acc_ref):
    k = pl.program_id(1)

    @pl.when(k == 0)
    def _():
        acc_ref[...] = jnp.zeros_like(acc_ref)

    acc_ref[...] += jnp.dot(x_ref[...], w_ref[...],
                            preferred_element_type=jnp.float32)

    @pl.when(k == pl.num_programs(1) - 1)
    def _():
        feat = jnp.maximum(acc_ref[...], 0.0)                 # (3N, tn) relu features
        max_ref[...] = jnp.max(feat, axis=1, keepdims=True)   # per-row tile max
        # fc partial logit: VPU multiply + lane reduction (no 1-column MXU matmul).
        logit_ref[...] = jnp.sum(feat * fcw_ref[...], axis=1, keepdims=True)


def component_stats(x_stacked_bf16, w_comp_bf16, fc_w_row, *, tn=1024, tk=256):
    m, k = x_stacked_bf16.shape
    kw, f = w_comp_bf16.shape
    assert kw == k
    tn = min(tn, f)
    tk = min(tk, k)
    assert f % tn == 0 and k % tk == 0, "toy sizes must tile evenly"
    nj, nk = f // tn, k // tk

    return pl.pallas_call(
        _feat_stats_kernel,
        out_shape=(jax.ShapeDtypeStruct((nj, m, 1), jnp.float32),
                   jax.ShapeDtypeStruct((nj, m, 1), jnp.float32)),
        grid_spec=pltpu.PrefetchScalarGridSpec(
            num_scalar_prefetch=0,
            grid=(nj, nk),
            in_specs=[
                pl.BlockSpec((m, tk), lambda j, kk: (0, kk)),    # stacked inputs
                pl.BlockSpec((tk, tn), lambda j, kk: (kk, j)),   # component weight
                pl.BlockSpec((1, tn), lambda j, kk: (0, j)),     # fc weight row
            ],
            out_specs=[
                pl.BlockSpec((None, m, 1), lambda j, kk: (j, 0, 0)),
                pl.BlockSpec((None, m, 1), lambda j, kk: (j, 0, 0)),
            ],
            scratch_shapes=[pltpu.VMEM((m, tn), jnp.float32)],
        ),
        compiler_params=pltpu.CompilerParams(
            dimension_semantics=("parallel", "arbitrary")),
    )(x_stacked_bf16, w_comp_bf16, fc_w_row)


# ----------------------------------------------------------------------------
# Kernel 2: tiny finalize — reduce per-F-tile stats, cross-stream mixing softmax,
# fc bias (SMEM scalar), sigmoid.  All operands are O(3N) scalars.
# ----------------------------------------------------------------------------
def _head_kernel(max_ref, logit_ref, b_ref, o_ref):
    m_all = max_ref[...]        # (nj, 3N, 1)
    l_all = logit_ref[...]      # (nj, 3N, 1)
    nj = m_all.shape[0]
    m = m_all[0]
    l = l_all[0]
    for t in range(1, nj):      # static unroll over F-tile stats
        m = jnp.maximum(m, m_all[t])
        l = l + l_all[t]

    n = o_ref.shape[0] // 3
    m1, m2, m3 = m[0:n], m[n:2 * n], m[2 * n:3 * n]
    l1, l2, l3 = l[0:n], l[n:2 * n], l[2 * n:3 * n]

    # Numerically stable, mathematically identical mixing softmax.
    c = jnp.maximum(jnp.maximum(m1, m2), m3)
    e1 = jnp.exp(m1 - c)
    e2 = jnp.exp(m2 - c)
    e3 = jnp.exp(m3 - c)
    inv = pl.reciprocal(e1 + e2 + e3, approx=True)
    b = b_ref[0]

    def sig(z):
        return 1.0 / (1.0 + jnp.exp(-z))

    # fc(a_i * x_i) = a_i * (x_i @ w) + b  (a_i is a per-row scalar) -> exact fusion.
    o_ref[0:n, :] = sig(e1 * inv * l1 + b)
    o_ref[n:2 * n, :] = sig(e2 * inv * l2 + b)
    o_ref[2 * n:3 * n, :] = sig(e3 * inv * l3 + b)


def mix_head(max_stats, logit_stats, fc_b):
    nj, m, _ = max_stats.shape
    return pl.pallas_call(
        _head_kernel,
        out_shape=jax.ShapeDtypeStruct((m, 1), jnp.float32),
        grid_spec=pltpu.PrefetchScalarGridSpec(
            num_scalar_prefetch=0,
            grid=(1,),
            in_specs=[
                pl.BlockSpec((nj, m, 1), lambda i: (0, 0, 0)),
                pl.BlockSpec((nj, m, 1), lambda i: (0, 0, 0)),
                pl.BlockSpec(memory_space=pltpu.MemorySpace.SMEM),   # scalar bias
            ],
            out_specs=pl.BlockSpec((m, 1), lambda i: (0, 0)),
        ),
    )(max_stats, logit_stats, fc_b)


# ----------------------------------------------------------------------------
# Full forward
# ----------------------------------------------------------------------------
@jax.jit
def mixdcnn_forward(x1, x2, x3, w_comp, fc_w, fc_b):
    n = x1.shape[0]
    # Stack the three streams so the component weight is streamed from HBM once.
    x = jnp.concatenate(
        [x1.reshape(n, -1), x2.reshape(n, -1), x3.reshape(n, -1)], axis=0)
    # Frozen backbone -> bf16 weights/activations for the MXU, f32 accumulation.
    x_bf = x.astype(jnp.bfloat16)
    w_bf = w_comp.astype(jnp.bfloat16)
    fcw_row = fc_w.reshape(1, -1).astype(jnp.float32)
    max_stats, logit_stats = component_stats(x_bf, w_bf, fcw_row)
    return mix_head(max_stats, logit_stats, fc_b)


def _reference_forward(x1, x2, x3, w_comp, fc_w, fc_b):
    """Pure-JAX reference of the same semantics (same bf16 matmul precision)."""
    n = x1.shape[0]
    w_bf = w_comp.astype(jnp.bfloat16)

    def feat(x):
        xb = x.reshape(n, -1).astype(jnp.bfloat16)
        return jnp.maximum(
            jnp.dot(xb, w_bf, preferred_element_type=jnp.float32), 0.0)

    f1, f2, f3 = feat(x1), feat(x2), feat(x3)
    c1 = jnp.max(f1, axis=1, keepdims=True)
    c2 = jnp.max(f2, axis=1, keepdims=True)
    c3 = jnp.max(f3, axis=1, keepdims=True)
    s = jnp.exp(c1) + jnp.exp(c2) + jnp.exp(c3)
    zn = jnp.concatenate(
        [(jnp.exp(c1) / s) * f1, (jnp.exp(c2) / s) * f2, (jnp.exp(c3) / s) * f3],
        axis=0)
    return jax.nn.sigmoid(zn @ fc_w.reshape(-1, 1) + fc_b[0])


if __name__ == "__main__":
    key = jax.random.PRNGKey(0)
    k_x1, k_x2, k_x3, k_wc, k_fc = jax.random.split(key, 5)

    # Small shapes: batch=2 per stream, 3x16x16 images (NCHW).
    N, C, H, W = 2, 3, 16, 16
    K = C * H * W

    x1 = jax.random.normal(k_x1, (N, C, H, W), dtype=jnp.float32)
    x2 = jax.random.normal(k_x2, (N, C, H, W), dtype=jnp.float32)
    x3 = jax.random.normal(k_x3, (N, C, H, W), dtype=jnp.float32)

    # Component stand-in: (K, FEATURES) ReLU projection (frozen "backbone").
    w_comp = jax.random.normal(k_wc, (K, FEATURES), dtype=jnp.float32) * (2.0 / K) ** 0.5
    # fc: torch layout (1, FEATURES), kaiming_normal_ -> std = sqrt(2 / fan_in); bias 0.
    fc_w = jax.random.normal(k_fc, (1, FEATURES), dtype=jnp.float32) * (2.0 / FEATURES) ** 0.5
    fc_b = jnp.zeros((1,), dtype=jnp.float32)

    z = mixdcnn_forward(x1, x2, x3, w_comp, fc_w, fc_b)
    z = jax.block_until_ready(z)

    z_ref = _reference_forward(x1, x2, x3, w_comp, fc_w, fc_b)
    assert z.shape == (3 * N, 1)
    assert jnp.allclose(z, z_ref, rtol=2e-3, atol=2e-3), (
        f"mismatch: max abs err {jnp.max(jnp.abs(z - z_ref))}")

    print("KERNEL_OK")
</pallas_src>

<mosaic_0001>
module attributes {stable_mosaic.version = 11 : i64} {
  func.func @_feat_stats_kernel(%arg0: i32, %arg1: i32, %arg2: memref<6x256xbf16, #tpu.memory_space<vmem>>, %arg3: memref<256x1024xbf16, #tpu.memory_space<vmem>>, %arg4: memref<1x1024xf32, #tpu.memory_space<vmem>>, %arg5: memref<1x6x1xf32, #tpu.memory_space<vmem>>, %arg6: memref<1x6x1xf32, #tpu.memory_space<vmem>>, %arg7: memref<6x1024xf32, #tpu.memory_space<vmem>>) attributes {dimension_semantics = [#tpu.dimension_semantics<parallel>, #tpu.dimension_semantics<arbitrary>], iteration_bounds = array<i64: 4, 3>, scalar_prefetch = 0 : i64, scratch_operands = 1 : i64, tpu.core_type = #tpu.core_type<tc>, window_params = [{transform_indices = @transform_0, window_bounds = array<i64: 6, 256>}, {transform_indices = @transform_1, window_bounds = array<i64: 256, 1024>}, {transform_indices = @transform_2, window_bounds = array<i64: 1, 1024>}, {transform_indices = @transform_3, window_bounds = array<i64: 1, 6, 1>}, {transform_indices = @transform_4, window_bounds = array<i64: 1, 6, 1>}]} {
    %c0_i32 = arith.constant 0 : i32
    %0 = arith.cmpi eq, %arg1, %c0_i32 : i32
    %1 = arith.extui %0 : i1 to i32
    %c0_i32_0 = arith.constant 0 : i32
    %2 = arith.cmpi ne, %1, %c0_i32_0 : i32
    scf.if %2 {
      %cst_9 = arith.constant 0.000000e+00 : f32
      %12 = vector.broadcast %cst_9 : f32 to vector<6x1024xf32>
      %c0_10 = arith.constant 0 : index
      %c0_11 = arith.constant 0 : index
      %13 = vector.load %arg7[%c0_10, %c0_11] : memref<6x1024xf32, #tpu.memory_space<vmem>>, vector<6x1024xf32>
      tpu.vector_store %arg7[%c0_10, %c0_11], %12 {strides = array<i32>} : memref<6x1024xf32, #tpu.memory_space<vmem>>, vector<6x1024xf32>,
    } else {
    }
    %c0 = arith.constant 0 : index
    %c0_1 = arith.constant 0 : index
    %3 = vector.load %arg7[%c0, %c0_1] : memref<6x1024xf32, #tpu.memory_space<vmem>>, vector<6x1024xf32>
    %c0_2 = arith.constant 0 : index
    %c0_3 = arith.constant 0 : index
    %4 = vector.load %arg2[%c0_2, %c0_3] : memref<6x256xbf16, #tpu.memory_space<vmem>>, vector<6x256xbf16>
    %c0_4 = arith.constant 0 : index
    %c0_5 = arith.constant 0 : index
    %5 = vector.load %arg3[%c0_4, %c0_5] : memref<256x1024xbf16, #tpu.memory_space<vmem>>, vector<256x1024xbf16>
    %cst = arith.constant dense<0.000000e+00> : vector<6x1024xf32>
    %6 = tpu.matmul %4, %5, %cst {dimension_numbers = #tpu.dot_dimension_numbers<[1], [0], [0], [1], [0, 0, 1, 1], [], []>} : vector<6x256xbf16>, vector<256x1024xbf16>, vector<6x1024xf32> -> vector<6x1024xf32>
    %7 = arith.addf %3, %6 : vector<6x1024xf32>
    %c0_6 = arith.constant 0 : index
    %c0_7 = arith.constant 0 : index
    %8 = vector.load %arg7[%c0_6, %c0_7] : memref<6x1024xf32, #tpu.memory_space<vmem>>, vector<6x1024xf32>
    tpu.vector_store %arg7[%c0_6, %c0_7], %7 {strides = array<i32>} : memref<6x1024xf32, #tpu.memory_space<vmem>>, vector<6x1024xf32>,
    %c2_i32 = arith.constant 2 : i32
    %9 = arith.cmpi eq, %arg1, %c2_i32 : i32
    %10 = arith.extui %9 : i1 to i32
    %c0_i32_8 = arith.constant 0 : i32
    %11 = arith.cmpi ne, %10, %c0_i32_8 : i32
    scf.if %11 {
      %c0_9 = arith.constant 0 : index
      %c0_10 = arith.constant 0 : index
      %12 = vector.load %arg7[%c0_9, %c0_10] : memref<6x1024xf32, #tpu.memory_space<vmem>>, vector<6x1024xf32>
      %cst_11 = arith.constant 0.000000e+00 : f32
      %13 = vector.broadcast %cst_11 : f32 to vector<6x1024xf32>
      %14 = arith.maximumf %12, %13 : vector<6x1024xf32>
      %cst_12 = arith.constant dense<0xFF800000> : vector<6xf32>
      %15 = vector.multi_reduction <maximumf>, %14, %cst_12 [1] : vector<6x1024xf32> to vector<6xf32>
      %16 = vector.shape_cast %15 : vector<6xf32> to vector<6x1xf32>
      %c0_13 = arith.constant 0 : index
      %c0_14 = arith.constant 0 : index
      %c0_15 = arith.constant 0 : index
      %17 = vector.load %arg5[%c0_13, %c0_14, %c0_15] : memref<1x6x1xf32, #tpu.memory_space<vmem>>, vector<1x6x1xf32>
      %18 = vector.shape_cast %17 : vector<1x6x1xf32> to vector<6x1xf32>
      %19 = vector.shape_cast %16 : vector<6x1xf32> to vector<1x6x1xf32>
      tpu.vector_store %arg5[%c0_13, %c0_14, %c0_15], %19 {strides = array<i32>} : memref<1x6x1xf32, #tpu.memory_space<vmem>>, vector<1x6x1xf32>,
      %c0_16 = arith.constant 0 : index
      %c0_17 = arith.constant 0 : index
      %20 = vector.load %arg4[%c0_16, %c0_17] : memref<1x1024xf32, #tpu.memory_space<vmem>>, vector<1x1024xf32>
      %21 = vector.broadcast %20 : vector<1x1024xf32> to vector<6x1024xf32>
      %22 = arith.mulf %14, %21 : vector<6x1024xf32>
      %cst_18 = arith.constant dense<0.000000e+00> : vector<6xf32>
      %23 = vector.multi_reduction <add>, %22, %cst_18 [1] : vector<6x1024xf32> to vector<6xf32>
      %24 = vector.shape_cast %23 : vector<6xf32> to vector<6x1xf32>
      %c0_19 = arith.constant 0 : index
      %c0_20 = arith.constant 0 : index
      %c0_21 = arith.constant 0 : index
      %25 = vector.load %arg6[%c0_19, %c0_20, %c0_21] : memref<1x6x1xf32, #tpu.memory_space<vmem>>, vector<1x6x1xf32>
      %26 = vector.shape_cast %25 : vector<1x6x1xf32> to vector<6x1xf32>
      %27 = vector.shape_cast %24 : vector<6x1xf32> to vector<1x6x1xf32>
      tpu.vector_store %arg6[%c0_19, %c0_20, %c0_21], %27 {strides = array<i32>} : memref<1x6x1xf32, #tpu.memory_space<vmem>>, vector<1x6x1xf32>,
    } else {
    }
    return
  }
  func.func @transform_0(%arg0: i32, %arg1: i32) -> (i32, i32) {
    %c0_i32 = arith.constant 0 : i32
    %c0_i32_0 = arith.constant 0 : i32
    return %c0_i32, %arg1 : i32, i32
  }
  func.func @transform_1(%arg0: i32, %arg1: i32) -> (i32, i32) {
    %c0_i32 = arith.constant 0 : i32
    return %arg1, %arg0 : i32, i32
  }
  func.func @transform_2(%arg0: i32, %arg1: i32) -> (i32, i32) {
    %c0_i32 = arith.constant 0 : i32
    %c0_i32_0 = arith.constant 0 : i32
    return %c0_i32, %arg0 : i32, i32
  }
  func.func @transform_3(%arg0: i32, %arg1: i32) -> (i32, i32, i32) {
    %c0_i32 = arith.constant 0 : i32
    %c0_i32_0 = arith.constant 0 : i32
    %c0_i32_1 = arith.constant 0 : i32
    return %arg0, %c0_i32, %c0_i32_0 : i32, i32, i32
  }
  func.func @transform_4(%arg0: i32, %arg1: i32) -> (i32, i32, i32) {
    %c0_i32 = arith.constant 0 : i32
    %c0_i32_0 = arith.constant 0 : i32
    %c0_i32_1 = arith.constant 0 : i32
    return %arg0, %c0_i32, %c0_i32_0 : i32, i32, i32
  }
}

module attributes {stable_mosaic.version = 11 : i64} {
  func.func @_head_kernel(%arg0: i32, %arg1: memref<4x6x1xf32, #tpu.memory_space<vmem>>, %arg2: memref<4x6x1xf32, #tpu.memory_space<vmem>>, %arg3: memref<1xf32, #tpu.memory_space<smem>>, %arg4: memref<6x1xf32, #tpu.memory_space<vmem>>) attributes {dimension_semantics = [#tpu.dimension_semantics<arbitrary>], iteration_bounds = array<i64: 1>, scalar_prefetch = 0 : i64, scratch_operands = 0 : i64, tpu.core_type = #tpu.core_type<tc>, window_params = [{pipeline_mode = #tpu.pipeline_mode<synchronous>, transform_indices = @transform_0, window_bounds = array<i64: 4, 6, 1>}, {pipeline_mode = #tpu.pipeline_mode<synchronous>, transform_indices = @transform_1, window_bounds = array<i64: 4, 6, 1>}, {transform_indices = @transform_2, window_bounds = array<i64: 1>}, {pipeline_mode = #tpu.pipeline_mode<synchronous>, transform_indices = @transform_3, window_bounds = array<i64: 6, 1>}]} {
    %c0 = arith.constant 0 : index
    %c0_0 = arith.constant 0 : index
    %c0_1 = arith.constant 0 : index
    %0 = vector.load %arg1[%c0, %c0_0, %c0_1] : memref<4x6x1xf32, #tpu.memory_space<vmem>>, vector<4x6x1xf32>
    %c0_2 = arith.constant 0 : index
    %c0_3 = arith.constant 0 : index
    %c0_4 = arith.constant 0 : index
    %1 = vector.load %arg2[%c0_2, %c0_3, %c0_4] : memref<4x6x1xf32, #tpu.memory_space<vmem>>, vector<4x6x1xf32>
    %2 = vector.extract_strided_slice %0 {offsets = [0, 0, 0], sizes = [1, 6, 1], strides = [1, 1, 1]} : vector<4x6x1xf32> to vector<1x6x1xf32>
    %3 = vector.shape_cast %2 : vector<1x6x1xf32> to vector<6x1xf32>
    %4 = vector.extract_strided_slice %1 {offsets = [0, 0, 0], sizes = [1, 6, 1], strides = [1, 1, 1]} : vector<4x6x1xf32> to vector<1x6x1xf32>
    %5 = vector.shape_cast %4 : vector<1x6x1xf32> to vector<6x1xf32>
    %6 = vector.extract_strided_slice %0 {offsets = [1, 0, 0], sizes = [1, 6, 1], strides = [1, 1, 1]} : vector<4x6x1xf32> to vector<1x6x1xf32>
    %7 = vector.shape_cast %6 : vector<1x6x1xf32> to vector<6x1xf32>
    %8 = arith.maximumf %3, %7 : vector<6x1xf32>
    %9 = vector.extract_strided_slice %1 {offsets = [1, 0, 0], sizes = [1, 6, 1], strides = [1, 1, 1]} : vector<4x6x1xf32> to vector<1x6x1xf32>
    %10 = vector.shape_cast %9 : vector<1x6x1xf32> to vector<6x1xf32>
    %11 = arith.addf %5, %10 : vector<6x1xf32>
    %12 = vector.extract_strided_slice %0 {offsets = [2, 0, 0], sizes = [1, 6, 1], strides = [1, 1, 1]} : vector<4x6x1xf32> to vector<1x6x1xf32>
    %13 = vector.shape_cast %12 : vector<1x6x1xf32> to vector<6x1xf32>
    %14 = arith.maximumf %8, %13 : vector<6x1xf32>
    %15 = vector.extract_strided_slice %1 {offsets = [2, 0, 0], sizes = [1, 6, 1], strides = [1, 1, 1]} : vector<4x6x1xf32> to vector<1x6x1xf32>
    %16 = vector.shape_cast %15 : vector<1x6x1xf32> to vector<6x1xf32>
    %17 = arith.addf %11, %16 : vector<6x1xf32>
    %18 = vector.extract_strided_slice %0 {offsets = [3, 0, 0], sizes = [1, 6, 1], strides = [1, 1, 1]} : vector<4x6x1xf32> to vector<1x6x1xf32>
    %19 = vector.shape_cast %18 : vector<1x6x1xf32> to vector<6x1xf32>
    %20 = arith.maximumf %14, %19 : vector<6x1xf32>
    %21 = vector.extract_strided_slice %1 {offsets = [3, 0, 0], sizes = [1, 6, 1], strides = [1, 1, 1]} : vector<4x6x1xf32> to vector<1x6x1xf32>
    %22 = vector.shape_cast %21 : vector<1x6x1xf32> to vector<6x1xf32>
    %23 = arith.addf %17, %22 : vector<6x1xf32>
    %24 = vector.extract_strided_slice %20 {offsets = [0, 0], sizes = [2, 1], strides = [1, 1]} : vector<6x1xf32> to vector<2x1xf32>
    %25 = vector.extract_strided_slice %20 {offsets = [2, 0], sizes = [2, 1], strides = [1, 1]} : vector<6x1xf32> to vector<2x1xf32>
    %26 = vector.extract_strided_slice %20 {offsets = [4, 0], sizes = [2, 1], strides = [1, 1]} : vector<6x1xf32> to vector<2x1xf32>
    %27 = vector.extract_strided_slice %23 {offsets = [0, 0], sizes = [2, 1], strides = [1, 1]} : vector<6x1xf32> to vector<2x1xf32>
    %28 = vector.extract_strided_slice %23 {offsets = [2, 0], sizes = [2, 1], strides = [1, 1]} : vector<6x1xf32> to vector<2x1xf32>
    %29 = vector.extract_strided_slice %23 {offsets = [4, 0], sizes = [2, 1], strides = [1, 1]} : vector<6x1xf32> to vector<2x1xf32>
    %30 = arith.maximumf %24, %25 : vector<2x1xf32>
    %31 = arith.maximumf %30, %26 : vector<2x1xf32>
    %32 = arith.subf %24, %31 : vector<2x1xf32>
    %33 = math.exp %32 : vector<2x1xf32>
    %34 = arith.subf %25, %31 : vector<2x1xf32>
    %35 = math.exp %34 : vector<2x1xf32>
    %36 = arith.subf %26, %31 : vector<2x1xf32>
    %37 = math.exp %36 : vector<2x1xf32>
    %38 = arith.addf %33, %35 : vector<2x1xf32>
    %39 = arith.addf %38, %37 : vector<2x1xf32>
    %40 = tpu.reciprocal %39 {approx = true} : vector<2x1xf32> -> vector<2x1xf32>
    %c0_5 = arith.constant 0 : index
    %41 = memref.load %arg3[%c0_5] : memref<1xf32, #tpu.memory_space<smem>>
    %42 = arith.mulf %33, %40 : vector<2x1xf32>
    %43 = arith.mulf %42, %27 : vector<2x1xf32>
    %44 = vector.broadcast %41 : f32 to vector<2x1xf32>
    %45 = arith.addf %43, %44 : vector<2x1xf32>
    %cst = arith.constant 0.000000e+00 : f32
    %46 = vector.broadcast %cst : f32 to vector<2x1xf32>
    %47 = arith.subf %46, %45 : vector<2x1xf32>
    %48 = math.exp %47 : vector<2x1xf32>
    %cst_6 = arith.constant 1.000000e+00 : f32
    %49 = vector.broadcast %cst_6 : f32 to vector<2x1xf32>
    %50 = arith.addf %49, %48 : vector<2x1xf32>
    %cst_7 = arith.constant 1.000000e+00 : f32
    %51 = vector.broadcast %cst_7 : f32 to vector<2x1xf32>
    %52 = arith.divf %51, %50 : vector<2x1xf32>
    %c0_8 = arith.constant 0 : index
    %c0_9 = arith.constant 0 : index
    %53 = vector.load %arg4[%c0_8, %c0_9] : memref<6x1xf32, #tpu.memory_space<vmem>>, vector<2x1xf32>
    tpu.vector_store %arg4[%c0_8, %c0_9], %52 {strides = array<i32>} : memref<6x1xf32, #tpu.memory_space<vmem>>, vector<2x1xf32>,
    %54 = arith.mulf %35, %40 : vector<2x1xf32>
    %55 = arith.mulf %54, %28 : vector<2x1xf32>
    %56 = vector.broadcast %41 : f32 to vector<2x1xf32>
    %57 = arith.addf %55, %56 : vector<2x1xf32>
    %cst_10 = arith.constant 0.000000e+00 : f32
    %58 = vector.broadcast %cst_10 : f32 to vector<2x1xf32>
    %59 = arith.subf %58, %57 : vector<2x1xf32>
    %60 = math.exp %59 : vector<2x1xf32>
    %cst_11 = arith.constant 1.000000e+00 : f32
    %61 = vector.broadcast %cst_11 : f32 to vector<2x1xf32>
    %62 = arith.addf %61, %60 : vector<2x1xf32>
    %cst_12 = arith.constant 1.000000e+00 : f32
    %63 = vector.broadcast %cst_12 : f32 to vector<2x1xf32>
    %64 = arith.divf %63, %62 : vector<2x1xf32>
    %c2 = arith.constant 2 : index
    %c0_13 = arith.constant 0 : index
    %65 = vector.load %arg4[%c2, %c0_13] : memref<6x1xf32, #tpu.memory_space<vmem>>, vector<2x1xf32>
    tpu.vector_store %arg4[%c2, %c0_13], %64 {strides = array<i32>} : memref<6x1xf32, #tpu.memory_space<vmem>>, vector<2x1xf32>,
    %66 = arith.mulf %37, %40 : vector<2x1xf32>
    %67 = arith.mulf %66, %29 : vector<2x1xf32>
    %68 = vector.broadcast %41 : f32 to vector<2x1xf32>
    %69 = arith.addf %67, %68 : vector<2x1xf32>
    %cst_14 = arith.constant 0.000000e+00 : f32
    %70 = vector.broadcast %cst_14 : f32 to vector<2x1xf32>
    %71 = arith.subf %70, %69 : vector<2x1xf32>
    %72 = math.exp %71 : vector<2x1xf32>
    %cst_15 = arith.constant 1.000000e+00 : f32
    %73 = vector.broadcast %cst_15 : f32 to vector<2x1xf32>
    %74 = arith.addf %73, %72 : vector<2x1xf32>
    %cst_16 = arith.constant 1.000000e+00 : f32
    %75 = vector.broadcast %cst_16 : f32 to vector<2x1xf32>
    %76 = arith.divf %75, %74 : vector<2x1xf32>
    %c4 = arith.constant 4 : index
    %c0_17 = arith.constant 0 : index
    %77 = vector.load %arg4[%c4, %c0_17] : memref<6x1xf32, #tpu.memory_space<vmem>>, vector<2x1xf32>
    tpu.vector_store %arg4[%c4, %c0_17], %76 {strides = array<i32>} : memref<6x1xf32, #tpu.memory_space<vmem>>, vector<2x1xf32>,
    return
  }
  func.func @transform_0(%arg0: i32) -> (i32, i32, i32) {
    %c0_i32 = arith.constant 0 : i32
    %c0_i32_0 = arith.constant 0 : i32
    %c0_i32_1 = arith.constant 0 : i32
    %c0_i32_2 = arith.constant 0 : i32
    return %c0_i32, %c0_i32_0, %c0_i32_1 : i32, i32, i32
  }
  func.func @transform_1(%arg0: i32) -> (i32, i32, i32) {
    %c0_i32 = arith.constant 0 : i32
    %c0_i32_0 = arith.constant 0 : i32
    %c0_i32_1 = arith.constant 0 : i32
    %c0_i32_2 = arith.constant 0 : i32
    return %c0_i32, %c0_i32_0, %c0_i32_1 : i32, i32, i32
  }
  func.func @transform_2(%arg0: i32) -> i32 {
    %c0_i32 = arith.constant 0 : i32
    %c0_i32_0 = arith.constant 0 : i32
    return %c0_i32 : i32
  }
  func.func @transform_3(%arg0: i32) -> (i32, i32) {
    %c0_i32 = arith.constant 0 : i32
    %c0_i32_0 = arith.constant 0 : i32
    %c0_i32_1 = arith.constant 0 : i32
    return %c0_i32, %c0_i32_0 : i32, i32
  }
}

</mosaic_0001>

<llo_original>
// kernel: mixdcnn_forward.3
$region0: #{mixdcnn_forward.3}
  #allocation0 [shape = 'u32[]', space=smem, size = 0x4, offset = 0x4, fixed_abs, tag = 'smem constant byte address 0x4 - core index']
  #allocation1 [shape = 'u32[144,128]{1,0:T(1,128)}', space=vmem, size = 0x12000, scoped, tag = 'internal scratch']
  #allocation2 [shape = 'f32[1]{0:T(128)S(6)}', space=smem, size = 0x200, scoped, tag = 'scoped memory for mixdcnn_forward.3']
  %s0 = inlined_call_operand.vmem [shape: f32[4,6,1], index: 0, kind: input, shape index: {}]
  %s1 = inlined_call_operand.vmem [shape: f32[4,6,1], index: 1, kind: input, shape index: {}]
  %s2 = inlined_call_operand.<no memory space> [shape: f32[1], index: 2, kind: input, shape index: {}]
  %s3 = inlined_call_operand.vmem [shape: f32[6,1], index: 3, kind: output, shape index: {}]
  %s4 = sld [smem:[#allocation0]]
  $region22: #{mixdcnn_forward.3} parent=0
    _
  %s6 = ssub.s32 1, %s4
  %s7 = scalar_select 0, %s6, %s4
  %8 = sst [smem:[#allocation2]] %s2
  // Predicated region
  $region2: #{mixdcnn_forward.3} parent=0 // pred_check
    _
  $region3: #{mixdcnn_forward.3} parent=0 // pred_check_branch
    %10 = sbr.rel (0) target = $region5
  $region4: #{mixdcnn_forward.3} parent=0 // pred_region
    _
  $region5: #{mixdcnn_forward.3} parent=0 // pred_fallthru
    _
  // Predicated region
  $region6: #{mixdcnn_forward.3} parent=0 // pred_check
    _
  $region7: #{mixdcnn_forward.3} parent=0 // pred_check_branch
    %12 = sbr.rel (0) target = $region9
  $region8: #{mixdcnn_forward.3} parent=0 // pred_region
    _
  $region9: #{mixdcnn_forward.3} parent=0 // pred_fallthru
    _
  // Predicated region
  $region10: #{mixdcnn_forward.3} parent=0 // pred_check
    _
  $region11: #{mixdcnn_forward.3} parent=0 // pred_check_branch
    %14 = sbr.rel (0) target = $region13
  $region12: #{mixdcnn_forward.3} parent=0 // pred_region
    _
  $region13: #{mixdcnn_forward.3} parent=0 // pred_fallthru
    _
  %v15 = vld [vmem:[%s0] sm:$0x3f]
  %v16 = vld [vmem:[%s0 + $0x8] sm:$0x3f]
  %v17 = vld [vmem:[%s0 + $0x10] sm:$0x3f]
  %v18 = vld [vmem:[%s0 + $0x18] sm:$0x3f]
  %v19 = vld [vmem:[%s1] sm:$0x3f]
  %v20 = vld [vmem:[%s1 + $0x8] sm:$0x3f]
  %v21 = vld [vmem:[%s1 + $0x10] sm:$0x3f]
  %v22 = vld [vmem:[%s1 + $0x18] sm:$0x3f]
  %v23 = vmax.f32 %v15, %v16
  %v24 = vadd.f32 %v19, %v20
  %v25 = vmax.f32 %v23, %v17
  %v26 = vadd.f32 %v24, %v21
  %v27 = vmax.f32 %v25, %v18
  %v28 = vadd.f32 %v26, %v22
  %v30 = vrot.slane %v27, 2
  %v32 = vmax.f32 %v27, %v30
  %v33 = vrot.slane %v27, 4
  %v35 = vmax.f32 %v32, %v33
  %v36 = vsub.f32 %v27, %v35
  %v37 = vmul.f32 %v36, 1.442695
  %v38 = vpow.pop %v37
  %v40 = vrot.slane %v35, 6
  %v42 = vsub.f32 %v27, %v40
  %v43 = vmul.f32 %v42, 1.442695
  %v44 = vpow.pop %v43
  %v45 = vrot.slane %v35, 4
  %v47 = vsub.f32 %v27, %v45
  %v48 = vmul.f32 %v47, 1.442695
  %v49 = vpow.pop %v48
  %v51 = vrot.slane %v44, 2
  %v53 = vadd.f32 %v38, %v51
  %v55 = vrot.slane %v49, 4
  %v57 = vadd.f32 %v53, %v55
  %v58 = vrcp.pop %v57
  %s59 = sld [smem:[#allocation2]]
  %v60 = vmul.f32 %v38, %v58
  %v61 = vmul.f32 %v60, %v28
  %v62 = vstv %s59
  %v63 = vadd.f32 %v61, %v62
  %v64 = vsub.f32 0.0, %v63
  %v65 = vmul.f32 %v64, 1.442695
  %v66 = vpow.pop %v65
  %v67 = vadd.f32 %v66, 1.0
  %v68 = vrcp.pop %v67
  %v69 = vmul.f32 1.0, %v68
  %vm70 = vcmask 1024
  %71 = vst.msk [vmem:[%s3] sm:$0x3] %vm70, %v69
  %v73 = vrot.slane %v58, 6
  %v75 = vmul.f32 %v44, %v73
  %v76 = vmul.f32 %v75, %v28
  %v77 = vadd.f32 %v76, %v62
  %v78 = vsub.f32 0.0, %v77
  %v79 = vmul.f32 %v78, 1.442695
  %v80 = vpow.pop %v79
  %v81 = vadd.f32 %v80, 1.0
  %v82 = vrcp.pop %v81
  %v83 = vmul.f32 1.0, %v82
  %vm84 = vcmask 3074
  %85 = vst.msk [vmem:[%s3] sm:$0xc] %vm84, %v83
  %v86 = vrot.slane %v58, 4
  %v88 = vmul.f32 %v49, %v86
  %v89 = vmul.f32 %v88, %v28
  %v90 = vadd.f32 %v89, %v62
  %v91 = vsub.f32 0.0, %v90
  %v92 = vmul.f32 %v91, 1.442695
  %v93 = vpow.pop %v92
  %v94 = vadd.f32 %v93, 1.0
  %v95 = vrcp.pop %v94
  %v96 = vmul.f32 1.0, %v95
  %vm97 = vcmask 5124
  %98 = vst.msk [vmem:[%s3] sm:$0x30] %vm97, %v96
  // Predicated region
  $region14: #{mixdcnn_forward.3} parent=0 // pred_check
    _
  $region15: #{mixdcnn_forward.3} parent=0 // pred_check_branch
    %100 = sbr.rel (0) target = $region17
  $region16: #{mixdcnn_forward.3} parent=0 // pred_region
    _
  $region17: #{mixdcnn_forward.3} parent=0 // pred_fallthru
    _
  // Predicated region
  $region18: #{mixdcnn_forward.3} parent=0 // pred_check
    _
  $region19: #{mixdcnn_forward.3} parent=0 // pred_check_branch
    %102 = sbr.rel (0) target = $region21
  $region20: #{mixdcnn_forward.3} parent=0 // pred_region
    _
  $region21: #{mixdcnn_forward.3} parent=0 // pred_fallthru
    _

// kernel: mixdcnn_forward.2
$region0: #{mixdcnn_forward.2}
  #allocation0 [shape = 'u32[]', space=smem, size = 0x4, offset = 0x4, fixed_abs, tag = 'smem constant byte address 0x4 - core index']
  #allocation1 [shape = 'u32[144,128]{1,0:T(1,128)}', space=vmem, size = 0x12000, scoped, tag = 'internal scratch']
  #allocation2 [shape = 'f32[6,1024]{1,0:T(8,128)}', space=vmem, size = 0x8000, scoped, tag = 'scratch operand']
  %s0 = inlined_call_operand.vmem [shape: bf16[6,768], index: 0, kind: input, shape index: {}]
  %s1 = inlined_call_operand.vmem [shape: bf16[768,4096], index: 1, kind: input, shape index: {}]
  %s2 = inlined_call_operand.vmem [shape: f32[1,4096], index: 2, kind: input, shape index: {}]
  %s3 = inlined_call_operand.vmem [shape: f32[4,6,1], index: 3, kind: output, shape index: {0}]
  %s4 = inlined_call_operand.vmem [shape: f32[4,6,1], index: 4, kind: output, shape index: {1}]
  %5 = xla_tuple %s3, %s4
  %s6 = sld [smem:[#allocation0]]
  $region84: #{mixdcnn_forward.2} parent=0
    _
  %s8 = ssub.s32 1, %s6
  %s9 = scalar_select 0, %s8, %s6
  $region1: #{mixdcnn_forward.2} parent=0
    #allocation3 [shape = 'u8[1048576]{0}', space=vmem, size = 0x100000, scoped, tag = 'input window, operand 1']
    loop: start=0, step=1, limit=14
    $region2: #{mixdcnn_forward.2} parent=1 // loop_pre_header
      _
    $region3: #{mixdcnn_forward.2} parent=1 // loop_header
      %s11 = sphi 0, %s15
      %p12 = scmp.ge.s32.totalorder %s11, 14
      %s18 = sphi 0, %s30
      %s19 = sphi 0, %s26
      %s20 = sphi 0, %s18
      %s21 = sphi 0, %s19
      %s22 = sphi 0, %s20
      %s23 = sphi 0, %s21
      %s33 = sphi 0, %s35
      %s36 = sphi 0, %s33
      %s37 = sphi 0, %s36
      %s53 = sphi 0, %s37
      %s61 = sphi 0, %s63
      %s64 = sphi 0, %s61
      %s65 = sphi 0, %s64
      %s81 = sphi 0, %s65
      %s87 = sphi 0, %s89
      %s90 = sphi 0, %s87
      %s91 = sphi 0, %s90
      %s107 = sphi 0, %s91
      %s113 = sphi 0, %s115
      %s116 = sphi 0, %s113
      %s117 = sphi 0, %s116
      %s133 = sphi 0, %s117
      %s139 = sphi 0, %s141
      %s142 = sphi 0, %s139
      %s143 = sphi 0, %s142
      %s159 = sphi 0, %s143
    $region4: #{mixdcnn_forward.2} parent=1 // loop_header_branch
      %14 = sbr.rel (%p12) target = $region8
    $region5: #{mixdcnn_forward.2} parent=1 // loop_body
      %s16 = ssub.s32 %s11, 1
      %s17 = ssub.s32 %s11, 2
      %s24 = sadd.s32 1, %s19
      %p25 = scmp.ge.s32.totalorder %s24, 3
      %s26 = scalar_select %p25, 0, %s24
      %s27 = sadd.s32 1, %s18
      %s28 = scalar_select %p25, %s27, %s18
      %p29 = scmp.ge.s32.totalorder %s28, 4
      %s30 = scalar_select %p29, 0, %s28
      %s31 = ssub.s32 %s19, %s26
      %p32 = scmp.eq.s32.totalorder %s31, 0
      %s34 = sadd.s32 %s33, 1
      %s35 = scalar_select %p32, %s33, %s34
      %p38 = pneg %p32
      %p39 = scmp.eq.s32.totalorder %s11, 11
      %p40 = por %p38, %p39
      %p41 = scmp.ne.s32.totalorder %s33, %s36
      %p42 = scmp.eq.s32.totalorder %s11, 0
      %p43 = por %p41, %p42
      %p44 = scmp.ne.s32.totalorder %s33, %s36
      %p45 = scmp.eq.s32.totalorder %s16, 11
      %p46 = por %p44, %p45
      %p47 = scmp.ne.s32.totalorder %s36, %s37
      %p48 = scmp.eq.s32.totalorder %s16, 0
      %p49 = por %p47, %p48
      %p50 = scmp.ne.s32.totalorder %s36, %s37
      %p51 = scmp.eq.s32.totalorder %s17, 11
      %p52 = por %p50, %p51
      %p54 = scmp.ne.s32.totalorder %s37, %s53
      %p55 = scmp.eq.s32.totalorder %s17, 0
      %p56 = por %p54, %p55
      %s57 = ssub.s32 %s19, %s26
      %s58 = ssub.s32 %s18, %s30
      %s59 = sor.u32 %s57, %s58
      %p60 = scmp.eq.s32.totalorder %s59, 0
      %s62 = sadd.s32 %s61, 1
      %s63 = scalar_select %p60, %s61, %s62
      %p66 = pneg %p60
      %p67 = scmp.eq.s32.totalorder %s11, 11
      %p68 = por %p66, %p67
      %p69 = scmp.ne.s32.totalorder %s61, %s64
      %p70 = scmp.eq.s32.totalorder %s11, 0
      %p71 = por %p69, %p70
      %p72 = scmp.ne.s32.totalorder %s61, %s64
      %p73 = scmp.eq.s32.totalorder %s16, 11
      %p74 = por %p72, %p73
      %p75 = scmp.ne.s32.totalorder %s64, %s65
      %p76 = scmp.eq.s32.totalorder %s16, 0
      %p77 = por %p75, %p76
      %p78 = scmp.ne.s32.totalorder %s64, %s65
      %p79 = scmp.eq.s32.totalorder %s17, 11
      %p80 = por %p78, %p79
      %p82 = scmp.ne.s32.totalorder %s65, %s81
      %p83 = scmp.eq.s32.totalorder %s17, 0
      %p84 = por %p82, %p83
      %s85 = ssub.s32 %s18, %s30
      %p86 = scmp.eq.s32.totalorder %s85, 0
      %s88 = sadd.s32 %s87, 1
      %s89 = scalar_select %p86, %s87, %s88
      %p92 = pneg %p86
      %p93 = scmp.eq.s32.totalorder %s11, 11
      %p94 = por %p92, %p93
      %p95 = scmp.ne.s32.totalorder %s87, %s90
      %p96 = scmp.eq.s32.totalorder %s11, 0
      %p97 = por %p95, %p96
      %p98 = scmp.ne.s32.totalorder %s87, %s90
      %p99 = scmp.eq.s32.totalorder %s16, 11
      %p100 = por %p98, %p99
      %p101 = scmp.ne.s32.totalorder %s90, %s91
      %p102 = scmp.eq.s32.totalorder %s16, 0
      %p103 = por %p101, %p102
      %p104 = scmp.ne.s32.totalorder %s90, %s91
      %p105 = scmp.eq.s32.totalorder %s17, 11
      %p106 = por %p104, %p105
      %p108 = scmp.ne.s32.totalorder %s91, %s107
      %p109 = scmp.eq.s32.totalorder %s17, 0
      %p110 = por %p108, %p109
      %s111 = ssub.s32 %s18, %s30
      %p112 = scmp.eq.s32.totalorder %s111, 0
      %s114 = sadd.s32 %s113, 1
      %s115 = scalar_select %p112, %s113, %s114
      %p118 = pneg %p112
      %p119 = scmp.eq.s32.totalorder %s11, 11
      %p120 = por %p118, %p119
      %p121 = scmp.ne.s32.totalorder %s113, %s116
      %p122 = scmp.eq.s32.totalorder %s11, 0
      %p123 = por %p121, %p122
      %p124 = scmp.ne.s32.totalorder %s113, %s116
      %p125 = scmp.eq.s32.totalorder %s16, 11
      %p126 = por %p124, %p125
      %p127 = scmp.ne.s32.totalorder %s116, %s117
      %p128 = scmp.eq.s32.totalorder %s16, 0
      %p129 = por %p127, %p128
      %p130 = scmp.ne.s32.totalorder %s116, %s117
      %p131 = scmp.eq.s32.totalorder %s17, 11
      %p132 = por %p130, %p131
      %p134 = scmp.ne.s32.totalorder %s117, %s133
      %p135 = scmp.eq.s32.totalorder %s17, 0
      %p136 = por %p134, %p135
      %s137 = ssub.s32 %s18, %s30
      %p138 = scmp.eq.s32.totalorder %s137, 0
      %s140 = sadd.s32 %s139, 1
      %s141 = scalar_select %p138, %s139, %s140
      %p144 = pneg %p138
      %p145 = scmp.eq.s32.totalorder %s11, 11
      %p146 = por %p144, %p145
      %p147 = scmp.ne.s32.totalorder %s139, %s142
      %p148 = scmp.eq.s32.totalorder %s11, 0
      %p149 = por %p147, %p148
      %p150 = scmp.ne.s32.totalorder %s139, %s142
      %p151 = scmp.eq.s32.totalorder %s16, 11
      %p152 = por %p150, %p151
      %p153 = scmp.ne.s32.totalorder %s142, %s143
      %p154 = scmp.eq.s32.totalorder %s16, 0
      %p155 = por %p153, %p154
      %p156 = scmp.ne.s32.totalorder %s142, %s143
      %p157 = scmp.eq.s32.totalorder %s17, 11
      %p158 = por %p156, %p157
      %p160 = scmp.ne.s32.totalorder %s143, %s159
      %p161 = scmp.eq.s32.totalorder %s17, 0
      %p162 = por %p160, %p161
      %p163 = scmp.le.s32.totalorder 1, %s11
      %p164 = scmp.lt.s32.totalorder %s11, 13
      %p165 = pnand %p163, %p164
      %p166 = pneg %p165
      // Predicated region
      $region9: #{mixdcnn_forward.2} parent=5 // pred_check
        _
      $region10: #{mixdcnn_forward.2} parent=5 // pred_check_branch
        %168 = sbr.rel (%p165) target = $region12
      $region11: #{mixdcnn_forward.2} parent=5 // pred_region
        %s169 = ssub.s32 %s11, 1
      $region12: #{mixdcnn_forward.2} parent=5 // pred_fallthru
        _
      %p170 = scmp.lt.s32.totalorder %s11, 12
      // Predicated region
      $region13: #{mixdcnn_forward.2} parent=5 // pred_check
        %p171 = pneg %p170
      $region14: #{mixdcnn_forward.2} parent=5 // pred_check_branch
        %173 = sbr.rel (%p171) target = $region16
      $region15: #{mixdcnn_forward.2} parent=5 // pred_region
        // Predicated region
        $region17: #{mixdcnn_forward.2} parent=15 // pred_check
          %p174 = pneg %p43
        $region18: #{mixdcnn_forward.2} parent=15 // pred_check_branch
          %176 = sbr.rel (%p174) target = $region20
        $region19: #{mixdcnn_forward.2} parent=15 // pred_region
          %s177 = smul.u32 2, %s19
          %p178 = scmp.lt.s32.totalorder %s177, 5
          %s179 = scalar_select %p178, %s177, 5
          %s180 = smul.addr %s179, 4
          %s181 = scalar_lea.vmem %s0, %s180
          %s182 = smul.u32 2, %s19
        $region20: #{mixdcnn_forward.2} parent=15 // pred_fallthru
          _
        // Predicated region
        $region21: #{mixdcnn_forward.2} parent=15 // pred_check
          %p183 = pneg %p71
        $region22: #{mixdcnn_forward.2} parent=15 // pred_check_branch
          %185 = sbr.rel (%p183) target = $region24
        $region23: #{mixdcnn_forward.2} parent=15 // pred_region
          %s186 = sand.u32 %s61, 1
          %s187 = sand.u32 %s61, 1
          %s188 = smul.addr %s187, 1024
          %s189 = scalar_lea.vmem [#allocation3], %s188
          %s190 = smul.u32 32, %s19
          %s191 = smul.u32 8, %s18
          %s192 = smul.addr %s190, 32
          %s193 = sadd.s32 %s191, %s192
          %s194 = smul.addr %s193, 4
          %s195 = scalar_lea.vmem %s1, %s194
          // Predicated region
          $region25: #{mixdcnn_forward.2} parent=23 // pred_check
            _
          $region26: #{mixdcnn_forward.2} parent=23 // pred_check_branch
            %197 = sbr.rel (0) target = $region28
          $region27: #{mixdcnn_forward.2} parent=23 // pred_region
            // Predicated region
            $region29: #{mixdcnn_forward.2} parent=27 // pred_check
              _
            $region30: #{mixdcnn_forward.2} parent=27 // pred_check_branch
              %199 = sbr.rel (0) target = $region32
            $region31: #{mixdcnn_forward.2} parent=27 // pred_region
              loop: start=0, step=1, limit=1
              $region33: #{mixdcnn_forward.2} parent=31 // loop_pre_header
                _
              $region34: #{mixdcnn_forward.2} parent=31 // loop_header
                %s201 = sphi 0, %s205
                %p202 = scmp.ge.s32.totalorder %s201, 1
                %s206 = sphi %s195, %s195
                %s207 = sphi %s189, %s189
              $region35: #{mixdcnn_forward.2} parent=31 // loop_header_branch
                %204 = sbr.rel (%p202) target = $region39
              $region36: #{mixdcnn_forward.2} parent=31 // loop_body
                %v208 = vld [vmem:[%s206] sm:$0xff]
                %209 = vst [vmem:[%s207] sm:$0xff] %v208
                %v210 = vld [vmem:[%s206 + $0x8] sm:$0xff]
                %211 = vst [vmem:[%s207 + $0x8] sm:$0xff] %v210
                %v212 = vld [vmem:[%s206 + $0x10] sm:$0xff]
                %213 = vst [vmem:[%s207 + $0x10] sm:$0xff] %v212
                %v214 = vld [vmem:[%s206 + $0x18] sm:$0xff]
                %215 = vst [vmem:[%s207 + $0x18] sm:$0xff] %v214
                %v216 = vld [vmem:[%s206 + $0x80] sm:$0xff]
                %217 = vst [vmem:[%s207 + $0x20] sm:$0xff] %v216
                %v218 = vld [vmem:[%s206 + $0x88] sm:$0xff]
                %219 = vst [vmem:[%s207 + $0x28] sm:$0xff] %v218
                %v220 = vld [vmem:[%s206 + $0x90] sm:$0xff]
                %221 = vst [vmem:[%s207 + $0x30] sm:$0xff] %v220
                %v222 = vld [vmem:[%s206 + $0x98] sm:$0xff]
                %223 = vst [vmem:[%s207 + $0x38] sm:$0xff] %v222
                %v224 = vld [vmem:[%s206 + $0x100] sm:$0xff]
                %225 = vst [vmem:[%s207 + $0x40] sm:$0xff] %v224
                %v226 = vld [vmem:[%s206 + $0x108] sm:$0xff]
                %227 = vst [vmem:[%s207 + $0x48] sm:$0xff] %v226
                %v228 = vld [vmem:[%s206 + $0x110] sm:$0xff]
                %229 = vst [vmem:[%s207 + $0x50] sm:$0xff] %v228
                %v230 = vld [vmem:[%s206 + $0x118] sm:$0xff]
                %231 = vst [vmem:[%s207 + $0x58] sm:$0xff] %v230
                %v232 = vld [vmem:[%s206 + $0x180] sm:$0xff]
                %233 = vst [vmem:[%s207 + $0x60] sm:$0xff] %v232
                %v234 = vld [vmem:[%s206 + $0x188] sm:$0xff]
                %235 = vst [vmem:[%s207 + $0x68] sm:$0xff] %v234
                %v236 = vld [vmem:[%s206 + $0x190] sm:$0xff]
                %237 = vst [vmem:[%s207 + $0x70] sm:$0xff] %v236
                %v238 = vld [vmem:[%s206 + $0x198] sm:$0xff]
                %239 = vst [vmem:[%s207 + $0x78] sm:$0xff] %v238
                %v240 = vld [vmem:[%s206 + $0x200] sm:$0xff]
                %241 = vst [vmem:[%s207 + $0x80] sm:$0xff] %v240
                %v242 = vld [vmem:[%s206 + $0x208] sm:$0xff]
                %243 = vst [vmem:[%s207 + $0x88] sm:$0xff] %v242
                %v244 = vld [vmem:[%s206 + $0x210] sm:$0xff]
                %245 = vst [vmem:[%s207 + $0x90] sm:$0xff] %v244
                %v246 = vld [vmem:[%s206 + $0x218] sm:$0xff]
                %247 = vst [vmem:[%s207 + $0x98] sm:$0xff] %v246
                %v248 = vld [vmem:[%s206 + $0x280] sm:$0xff]
                %249 = vst [vmem:[%s207 + $0xa0] sm:$0xff] %v248
                %v250 = vld [vmem:[%s206 + $0x288] sm:$0xff]
                %251 = vst [vmem:[%s207 + $0xa8] sm:$0xff] %v250
                %v252 = vld [vmem:[%s206 + $0x290] sm:$0xff]
                %253 = vst [vmem:[%s207 + $0xb0] sm:$0xff] %v252
                %v254 = vld [vmem:[%s206 + $0x298] sm:$0xff]
                %255 = vst [vmem:[%s207 + $0xb8] sm:$0xff] %v254
                %v256 = vld [vmem:[%s206 + $0x300] sm:$0xff]
                %257 = vst [vmem:[%s207 + $0xc0] sm:$0xff] %v256
                %v258 = vld [vmem:[%s206 + $0x308] sm:$0xff]
                %259 = vst [vmem:[%s207 + $0xc8] sm:$0xff] %v258
                %v260 = vld [vmem:[%s206 + $0x310] sm:$0xff]
                %261 = vst [vmem:[%s207 + $0xd0] sm:$0xff] %v260
                %v262 = vld [vmem:[%s206 + $0x318] sm:$0xff]
                %263 = vst [vmem:[%s207 + $0xd8] sm:$0xff] %v262
                %v264 = vld [vmem:[%s206 + $0x380] sm:$0xff]
                %265 = vst [vmem:[%s207 + $0xe0] sm:$0xff] %v264
                %v266 = vld [vmem:[%s206 + $0x388] sm:$0xff]
                %267 = vst [vmem:[%s207 + $0xe8] sm:$0xff] %v266
                %v268 = vld [vmem:[%s206 + $0x390] sm:$0xff]
                %269 = vst [vmem:[%s207 + $0xf0] sm:$0xff] %v268
                %v270 = vld [vmem:[%s206 + $0x398] sm:$0xff]
                %271 = vst [vmem:[%s207 + $0xf8] sm:$0xff] %v270
                %v272 = vld [vmem:[%s206 + $0x400] sm:$0xff]
                %273 = vst [vmem:[%s207 + $0x100] sm:$0xff] %v272
                %v274 = vld [vmem:[%s206 + $0x408] sm:$0xff]
                %275 = vst [vmem:[%s207 + $0x108] sm:$0xff] %v274
                %v276 = vld [vmem:[%s206 + $0x410] sm:$0xff]
                %277 = vst [vmem:[%s207 + $0x110] sm:$0xff] %v276
                %v278 = vld [vmem:[%s206 + $0x418] sm:$0xff]
                %279 = vst [vmem:[%s207 + $0x118] sm:$0xff] %v278
                %v280 = vld [vmem:[%s206 + $0x480] sm:$0xff]
                %281 = vst [vmem:[%s207 + $0x120] sm:$0xff] %v280
                %v282 = vld [vmem:[%s206 + $0x488] sm:$0xff]
                %283 = vst [vmem:[%s207 + $0x128] sm:$0xff] %v282
                %v284 = vld [vmem:[%s206 + $0x490] sm:$0xff]
                %285 = vst [vmem:[%s207 + $0x130] sm:$0xff] %v284
                %v286 = vld [vmem:[%s206 + $0x498] sm:$0xff]
                %287 = vst [vmem:[%s207 + $0x138] sm:$0xff] %v286
                %v288 = vld [vmem:[%s206 + $0x500] sm:$0xff]
                %289 = vst [vmem:[%s207 + $0x140] sm:$0xff] %v288
                %v290 = vld [vmem:[%s206 + $0x508] sm:$0xff]
                %291 = vst [vmem:[%s207 + $0x148] sm:$0xff] %v290
                %v292 = vld [vmem:[%s206 + $0x510] sm:$0xff]
                %293 = vst [vmem:[%s207 + $0x150] sm:$0xff] %v292
                %v294 = vld [vmem:[%s206 + $0x518] sm:$0xff]
                %295 = vst [vmem:[%s207 + $0x158] sm:$0xff] %v294
                %v296 = vld [vmem:[%s206 + $0x580] sm:$0xff]
                %297 = vst [vmem:[%s207 + $0x160] sm:$0xff] %v296
                %v298 = vld [vmem:[%s206 + $0x588] sm:$0xff]
                %299 = vst [vmem:[%s207 + $0x168] sm:$0xff] %v298
                %v300 = vld [vmem:[%s206 + $0x590] sm:$0xff]
                %301 = vst [vmem:[%s207 + $0x170] sm:$0xff] %v300
                %v302 = vld [vmem:[%s206 + $0x598] sm:$0xff]
                %303 = vst [vmem:[%s207 + $0x178] sm:$0xff] %v302
                %v304 = vld [vmem:[%s206 + $0x600] sm:$0xff]
                %305 = vst [vmem:[%s207 + $0x180] sm:$0xff] %v304
                %v306 = vld [vmem:[%s206 + $0x608] sm:$0xff]
                %307 = vst [vmem:[%s207 + $0x188] sm:$0xff] %v306
                %v308 = vld [vmem:[%s206 + $0x610] sm:$0xff]
                %309 = vst [vmem:[%s207 + $0x190] sm:$0xff] %v308
                %v310 = vld [vmem:[%s206 + $0x618] sm:$0xff]
                %311 = vst [vmem:[%s207 + $0x198] sm:$0xff] %v310
                %v312 = vld [vmem:[%s206 + $0x680] sm:$0xff]
                %313 = vst [vmem:[%s207 + $0x1a0] sm:$0xff] %v312
                %v314 = vld [vmem:[%s206 + $0x688] sm:$0xff]
                %315 = vst [vmem:[%s207 + $0x1a8] sm:$0xff] %v314
                %v316 = vld [vmem:[%s206 + $0x690] sm:$0xff]
                %317 = vst [vmem:[%s207 + $0x1b0] sm:$0xff] %v316
                %v318 = vld [vmem:[%s206 + $0x698] sm:$0xff]
                %319 = vst [vmem:[%s207 + $0x1b8] sm:$0xff] %v318
                %v320 = vld [vmem:[%s206 + $0x700] sm:$0xff]
                %321 = vst [vmem:[%s207 + $0x1c0] sm:$0xff] %v320
                %v322 = vld [vmem:[%s206 + $0x708] sm:$0xff]
                %323 = vst [vmem:[%s207 + $0x1c8] sm:$0xff] %v322
                %v324 = vld [vmem:[%s206 + $0x710] sm:$0xff]
                %325 = vst [vmem:[%s207 + $0x1d0] sm:$0xff] %v324
                %v326 = vld [vmem:[%s206 + $0x718] sm:$0xff]
                %327 = vst [vmem:[%s207 + $0x1d8] sm:$0xff] %v326
                %v328 = vld [vmem:[%s206 + $0x780] sm:$0xff]
                %329 = vst [vmem:[%s207 + $0x1e0] sm:$0xff] %v328
                %v330 = vld [vmem:[%s206 + $0x788] sm:$0xff]
                %331 = vst [vmem:[%s207 + $0x1e8] sm:$0xff] %v330
                %v332 = vld [vmem:[%s206 + $0x790] sm:$0xff]
                %333 = vst [vmem:[%s207 + $0x1f0] sm:$0xff] %v332
                %v334 = vld [vmem:[%s206 + $0x798] sm:$0xff]
                %335 = vst [vmem:[%s207 + $0x1f8] sm:$0xff] %v334
                %v336 = vld [vmem:[%s206 + $0x800] sm:$0xff]
                %337 = vst [vmem:[%s207 + $0x200] sm:$0xff] %v336
                %v338 = vld [vmem:[%s206 + $0x808] sm:$0xff]
                %339 = vst [vmem:[%s207 + $0x208] sm:$0xff] %v338
                %v340 = vld [vmem:[%s206 + $0x810] sm:$0xff]
                %341 = vst [vmem:[%s207 + $0x210] sm:$0xff] %v340
                %v342 = vld [vmem:[%s206 + $0x818] sm:$0xff]
                %343 = vst [vmem:[%s207 + $0x218] sm:$0xff] %v342
                %v344 = vld [vmem:[%s206 + $0x880] sm:$0xff]
                %345 = vst [vmem:[%s207 + $0x220] sm:$0xff] %v344
                %v346 = vld [vmem:[%s206 + $0x888] sm:$0xff]
                %347 = vst [vmem:[%s207 + $0x228] sm:$0xff] %v346
                %v348 = vld [vmem:[%s206 + $0x890] sm:$0xff]
                %349 = vst [vmem:[%s207 + $0x230] sm:$0xff] %v348
                %v350 = vld [vmem:[%s206 + $0x898] sm:$0xff]
                %351 = vst [vmem:[%s207 + $0x238] sm:$0xff] %v350
                %v352 = vld [vmem:[%s206 + $0x900] sm:$0xff]
                %353 = vst [vmem:[%s207 + $0x240] sm:$0xff] %v352
                %v354 = vld [vmem:[%s206 + $0x908] sm:$0xff]
                %355 = vst [vmem:[%s207 + $0x248] sm:$0xff] %v354
                %v356 = vld [vmem:[%s206 + $0x910] sm:$0xff]
                %357 = vst [vmem:[%s207 + $0x250] sm:$0xff] %v356
                %v358 = vld [vmem:[%s206 + $0x918] sm:$0xff]
                %359 = vst [vmem:[%s207 + $0x258] sm:$0xff] %v358
                %v360 = vld [vmem:[%s206 + $0x980] sm:$0xff]
                %361 = vst [vmem:[%s207 + $0x260] sm:$0xff] %v360
                %v362 = vld [vmem:[%s206 + $0x988] sm:$0xff]
                %363 = vst [vmem:[%s207 + $0x268] sm:$0xff] %v362
                %v364 = vld [vmem:[%s206 + $0x990] sm:$0xff]
                %365 = vst [vmem:[%s207 + $0x270] sm:$0xff] %v364
                %v366 = vld [vmem:[%s206 + $0x998] sm:$0xff]
                %367 = vst [vmem:[%s207 + $0x278] sm:$0xff] %v366
                %v368 = vld [vmem:[%s206 + $0xa00] sm:$0xff]
                %369 = vst [vmem:[%s207 + $0x280] sm:$0xff] %v368
                %v370 = vld [vmem:[%s206 + $0xa08] sm:$0xff]
                %371 = vst [vmem:[%s207 + $0x288] sm:$0xff] %v370
                %v372 = vld [vmem:[%s206 + $0xa10] sm:$0xff]
                %373 = vst [vmem:[%s207 + $0x290] sm:$0xff] %v372
                %v374 = vld [vmem:[%s206 + $0xa18] sm:$0xff]
                %375 = vst [vmem:[%s207 + $0x298] sm:$0xff] %v374
                %v376 = vld [vmem:[%s206 + $0xa80] sm:$0xff]
                %377 = vst [vmem:[%s207 + $0x2a0] sm:$0xff] %v376
                %v378 = vld [vmem:[%s206 + $0xa88] sm:$0xff]
                %379 = vst [vmem:[%s207 + $0x2a8] sm:$0xff] %v378
                %v380 = vld [vmem:[%s206 + $0xa90] sm:$0xff]
                %381 = vst [vmem:[%s207 + $0x2b0] sm:$0xff] %v380
                %v382 = vld [vmem:[%s206 + $0xa98] sm:$0xff]
                %383 = vst [vmem:[%s207 + $0x2b8] sm:$0xff] %v382
                %v384 = vld [vmem:[%s206 + $0xb00] sm:$0xff]
                %385 = vst [vmem:[%s207 + $0x2c0] sm:$0xff] %v384
                %v386 = vld [vmem:[%s206 + $0xb08] sm:$0xff]
                %387 = vst [vmem:[%s207 + $0x2c8] sm:$0xff] %v386
                %v388 = vld [vmem:[%s206 + $0xb10] sm:$0xff]
                %389 = vst [vmem:[%s207 + $0x2d0] sm:$0xff] %v388
                %v390 = vld [vmem:[%s206 + $0xb18] sm:$0xff]
                %391 = vst [vmem:[%s207 + $0x2d8] sm:$0xff] %v390
                %v392 = vld [vmem:[%s206 + $0xb80] sm:$0xff]
                %393 = vst [vmem:[%s207 + $0x2e0] sm:$0xff] %v392
                %v394 = vld [vmem:[%s206 + $0xb88] sm:$0xff]
                %395 = vst [vmem:[%s207 + $0x2e8] sm:$0xff] %v394
                %v396 = vld [vmem:[%s206 + $0xb90] sm:$0xff]
                %397 = vst [vmem:[%s207 + $0x2f0] sm:$0xff] %v396
                %v398 = vld [vmem:[%s206 + $0xb98] sm:$0xff]
                %399 = vst [vmem:[%s207 + $0x2f8] sm:$0xff] %v398
                %v400 = vld [vmem:[%s206 + $0xc00] sm:$0xff]
                %401 = vst [vmem:[%s207 + $0x300] sm:$0xff] %v400
                %v402 = vld [vmem:[%s206 + $0xc08] sm:$0xff]
                %403 = vst [vmem:[%s207 + $0x308] sm:$0xff] %v402
                %v404 = vld [vmem:[%s206 + $0xc10] sm:$0xff]
                %405 = vst [vmem:[%s207 + $0x310] sm:$0xff] %v404
                %v406 = vld [vmem:[%s206 + $0xc18] sm:$0xff]
                %407 = vst [vmem:[%s207 + $0x318] sm:$0xff] %v406
                %v408 = vld [vmem:[%s206 + $0xc80] sm:$0xff]
                %409 = vst [vmem:[%s207 + $0x320] sm:$0xff] %v408
                %v410 = vld [vmem:[%s206 + $0xc88] sm:$0xff]
                %411 = vst [vmem:[%s207 + $0x328] sm:$0xff] %v410
                %v412 = vld [vmem:[%s206 + $0xc90] sm:$0xff]
                %413 = vst [vmem:[%s207 + $0x330] sm:$0xff] %v412
                %v414 = vld [vmem:[%s206 + $0xc98] sm:$0xff]
                %415 = vst [vmem:[%s207 + $0x338] sm:$0xff] %v414
                %v416 = vld [vmem:[%s206 + $0xd00] sm:$0xff]
                %417 = vst [vmem:[%s207 + $0x340] sm:$0xff] %v416
                %v418 = vld [vmem:[%s206 + $0xd08] sm:$0xff]
                %419 = vst [vmem:[%s207 + $0x348] sm:$0xff] %v418
                %v420 = vld [vmem:[%s206 + $0xd10] sm:$0xff]
                %421 = vst [vmem:[%s207 + $0x350] sm:$0xff] %v420
                %v422 = vld [vmem:[%s206 + $0xd18] sm:$0xff]
                %423 = vst [vmem:[%s207 + $0x358] sm:$0xff] %v422
                %v424 = vld [vmem:[%s206 + $0xd80] sm:$0xff]
                %425 = vst [vmem:[%s207 + $0x360] sm:$0xff] %v424
                %v426 = vld [vmem:[%s206 + $0xd88] sm:$0xff]
                %427 = vst [vmem:[%s207 + $0x368] sm:$0xff] %v426
                %v428 = vld [vmem:[%s206 + $0xd90] sm:$0xff]
                %429 = vst [vmem:[%s207 + $0x370] sm:$0xff] %v428
                %v430 = vld [vmem:[%s206 + $0xd98] sm:$0xff]
                %431 = vst [vmem:[%s207 + $0x378] sm:$0xff] %v430
                %v432 = vld [vmem:[%s206 + $0xe00] sm:$0xff]
                %433 = vst [vmem:[%s207 + $0x380] sm:$0xff] %v432
                %v434 = vld [vmem:[%s206 + $0xe08] sm:$0xff]
                %435 = vst [vmem:[%s207 + $0x388] sm:$0xff] %v434
                %v436 = vld [vmem:[%s206 + $0xe10] sm:$0xff]
                %437 = vst [vmem:[%s207 + $0x390] sm:$0xff] %v436
                %v438 = vld [vmem:[%s206 + $0xe18] sm:$0xff]
                %439 = vst [vmem:[%s207 + $0x398] sm:$0xff] %v438
                %v440 = vld [vmem:[%s206 + $0xe80] sm:$0xff]
                %441 = vst [vmem:[%s207 + $0x3a0] sm:$0xff] %v440
                %v442 = vld [vmem:[%s206 + $0xe88] sm:$0xff]
                %443 = vst [vmem:[%s207 + $0x3a8] sm:$0xff] %v442
                %v444 = vld [vmem:[%s206 + $0xe90] sm:$0xff]
                %445 = vst [vmem:[%s207 + $0x3b0] sm:$0xff] %v444
                %v446 = vld [vmem:[%s206 + $0xe98] sm:$0xff]
                %447 = vst [vmem:[%s207 + $0x3b8] sm:$0xff] %v446
                %v448 = vld [vmem:[%s206 + $0xf00] sm:$0xff]
                %449 = vst [vmem:[%s207 + $0x3c0] sm:$0xff] %v448
                %v450 = vld [vmem:[%s206 + $0xf08] sm:$0xff]
                %451 = vst [vmem:[%s207 + $0x3c8] sm:$0xff] %v450
                %v452 = vld [vmem:[%s206 + $0xf10] sm:$0xff]
                %453 = vst [vmem:[%s207 + $0x3d0] sm:$0xff] %v452
                %v454 = vld [vmem:[%s206 + $0xf18] sm:$0xff]
                %455 = vst [vmem:[%s207 + $0x3d8] sm:$0xff] %v454
                %v456 = vld [vmem:[%s206 + $0xf80] sm:$0xff]
                %457 = vst [vmem:[%s207 + $0x3e0] sm:$0xff] %v456
                %v458 = vld [vmem:[%s206 + $0xf88] sm:$0xff]
                %459 = vst [vmem:[%s207 + $0x3e8] sm:$0xff] %v458
                %v460 = vld [vmem:[%s206 + $0xf90] sm:$0xff]
                %461 = vst [vmem:[%s207 + $0x3f0] sm:$0xff] %v460
                %v462 = vld [vmem:[%s206 + $0xf98] sm:$0xff]
                %463 = vst [vmem:[%s207 + $0x3f8] sm:$0xff] %v462
              $region37: #{mixdcnn_forward.2} parent=31 // loop_footer
                %s205 = sadd.s32 1, %s201
              $region38: #{mixdcnn_forward.2} parent=31 // loop_footer_branch
                %200 = sbr.rel target = $region34
              $region39: #{mixdcnn_forward.2} parent=31 // loop_exit
                _
            $region32: #{mixdcnn_forward.2} parent=27 // pred_fallthru
              _
            // Predicated region
            $region40: #{mixdcnn_forward.2} parent=27 // pred_check
              _
            $region41: #{mixdcnn_forward.2} parent=27 // pred_check_branch
              %465 = sbr.rel target = $region43
            $region42: #{mixdcnn_forward.2} parent=27 // pred_region
              _
            $region43: #{mixdcnn_forward.2} parent=27 // pred_fallthru
              _
          $region28: #{mixdcnn_forward.2} parent=23 // pred_fallthru
            _
          %466 = vnop
        $region24: #{mixdcnn_forward.2} parent=15 // pred_fallthru
          _
        // Predicated region
        $region44: #{mixdcnn_forward.2} parent=15 // pred_check
          %p467 = pneg %p97
        $region45: #{mixdcnn_forward.2} parent=15 // pred_check_branch
          %469 = sbr.rel (%p467) target = $region47
        $region46: #{mixdcnn_forward.2} parent=15 // pred_region
          %s470 = smul.u32 8, %s18
          %p471 = scmp.lt.s32.totalorder %s470, 31
          %s472 = scalar_select %p471, %s470, 31
          %s473 = scalar_lea.vmem %s2, %s472
          %s474 = smul.u32 8, %s18
        $region47: #{mixdcnn_forward.2} parent=15 // pred_fallthru
          _
      $region16: #{mixdcnn_forward.2} parent=5 // pred_fallthru
        _
      %p475 = scmp.le.s32.totalorder 1, %s11
      %p476 = scmp.lt.s32.totalorder %s11, 13
      %p477 = pnand %p475, %p476
      %p478 = pneg %p477
      // Predicated region
      $region48: #{mixdcnn_forward.2} parent=5 // pred_check
        _
      $region49: #{mixdcnn_forward.2} parent=5 // pred_check_branch
        %480 = sbr.rel (%p477) target = $region51
      $region50: #{mixdcnn_forward.2} parent=5 // pred_region
        %s481 = ssub.s32 %s11, 1
        %s482 = sand.u32 %s64, 1
        %s483 = sand.u32 %s64, 1
        %s484 = smul.addr %s483, 1024
        %s485 = scalar_lea.vmem [#allocation3], %s484
        // Predicated region
        $region52: #{mixdcnn_forward.2} parent=50 // pred_check
          %p486 = pneg %p77
        $region53: #{mixdcnn_forward.2} parent=50 // pred_check_branch
          %488 = sbr.rel (%p486) target = $region55
        $region54: #{mixdcnn_forward.2} parent=50 // pred_region
          _
        $region55: #{mixdcnn_forward.2} parent=50 // pred_fallthru
          _
        %s489 = smul.u32 2, %s21
        %p490 = scmp.lt.s32.totalorder %s489, 5
        %s491 = scalar_select %p490, %s489, 5
        %s492 = smul.addr %s491, 4
        %s493 = scalar_lea.vmem %s0, %s492
        %p494 = pneg %p49
        %p495 = pneg %p46
        %s496 = sand.u32 %s64, 1
        %s497 = sand.u32 %s64, 1
        %s498 = smul.addr %s497, 1024
        %s499 = scalar_lea.vmem [#allocation3], %s498
        %p500 = pneg %p77
        %p501 = pneg %p74
        %s502 = smul.u32 8, %s20
        %p503 = scmp.lt.s32.totalorder %s502, 31
        %s504 = scalar_select %p503, %s502, 31
        %s505 = scalar_lea.vmem %s2, %s504
        %p506 = pneg %p103
        %p507 = pneg %p100
        %p508 = pneg %p129
        %p509 = pneg %p126
        %p510 = scmp.lt.s32.totalorder %s20, 3
        %s511 = scalar_select %p510, %s20, 3
        %s512 = smul.addr %s511, 8
        %s513 = scalar_lea.vmem %s3, %s512
        %p514 = pneg %p155
        %p515 = pneg %p152
        %p516 = scmp.lt.s32.totalorder %s20, 3
        %s517 = scalar_select %p516, %s20, 3
        %s518 = smul.addr %s517, 8
        %s519 = scalar_lea.vmem %s4, %s518
        %s520 = smul.u32 2, %s21
        %p521 = scmp.lt.s32.totalorder %s520, 5
        %s522 = scalar_select %p521, %s520, 5
        %s523 = smul.addr %s522, 4
        %s524 = scalar_lea.vmem %s0, %s523
        %s525 = smul.u32 2, %s21
        %s526 = smul.u32 32, %s21
        %s527 = smul.u32 8, %s20
        %s528 = smul.u32 8, %s20
        %p529 = scmp.lt.s32.totalorder %s528, 31
        %s530 = scalar_select %p529, %s528, 31
        %s531 = scalar_lea.vmem %s2, %s530
        %s532 = smul.u32 8, %s20
        %p533 = scmp.lt.s32.totalorder %s20, 3
        %s534 = scalar_select %p533, %s20, 3
        %s535 = smul.addr %s534, 8
        %s536 = scalar_lea.vmem %s3, %s535
        %p537 = scmp.lt.s32.totalorder %s20, 3
        %s538 = scalar_select %p537, %s20, 3
        %s539 = smul.addr %s538, 8
        %s540 = scalar_lea.vmem %s4, %s539
        %p541 = scmp.eq.s32.totalorder %s21, 0
        // Predicated region
        $region56: #{mixdcnn_forward.2} parent=50 // pred_check
          %p542 = pneg %p541
        $region57: #{mixdcnn_forward.2} parent=50 // pred_check_branch
          %544 = sbr.rel (%p542) target = $region59
        $region58: #{mixdcnn_forward.2} parent=50 // pred_region
          %545 = vst [vmem:[#allocation2] sm:$0x3f] 0.0
          %546 = vst [vmem:[#allocation2 + $0x8] sm:$0x3f] 0.0
          %547 = vst [vmem:[#allocation2 + $0x10] sm:$0x3f] 0.0
          %548 = vst [vmem:[#allocation2 + $0x18] sm:$0x3f] 0.0
          %549 = vst [vmem:[#allocation2 + $0x20] sm:$0x3f] 0.0
          %550 = vst [vmem:[#allocation2 + $0x28] sm:$0x3f] 0.0
          %551 = vst [vmem:[#allocation2 + $0x30] sm:$0x3f] 0.0
          %552 = vst [vmem:[#allocation2 + $0x38] sm:$0x3f] 0.0
        $region59: #{mixdcnn_forward.2} parent=50 // pred_fallthru
          _
        %v553 = vld [vmem:[#allocation2] sm:$0x3f]
        %v554 = vld [vmem:[#allocation2 + $0x8] sm:$0x3f]
        %v555 = vld [vmem:[#allocation2 + $0x10] sm:$0x3f]
        %v556 = vld [vmem:[#allocation2 + $0x18] sm:$0x3f]
        %v557 = vld [vmem:[#allocation2 + $0x20] sm:$0x3f]
        %v558 = vld [vmem:[#allocation2 + $0x28] sm:$0x3f]
        %v559 = vld [vmem:[#allocation2 + $0x30] sm:$0x3f]
        %v560 = vld [vmem:[#allocation2 + $0x38] sm:$0x3f]
        %v561 = vld [vmem:[%s524] sm:$0x77]
        %v562 = vld [vmem:[%s485] sm:$0xff]
        %v563 = vld [vmem:[%s485 + $0x8] sm:$0xff]
        %v564 = vld [vmem:[%s485 + $0x10] sm:$0xff]
        %v565 = vld [vmem:[%s485 + $0x18] sm:$0xff]
        %v566 = vld [vmem:[%s485 + $0x20] sm:$0xff]
        %v567 = vld [vmem:[%s485 + $0x28] sm:$0xff]
        %v568 = vld [vmem:[%s485 + $0x30] sm:$0xff]
        %v569 = vld [vmem:[%s485 + $0x38] sm:$0xff]
        %v570 = vld [vmem:[%s485 + $0x40] sm:$0xff]
        %v571 = vld [vmem:[%s485 + $0x48] sm:$0xff]
        %v572 = vld [vmem:[%s485 + $0x50] sm:$0xff]
        %v573 = vld [vmem:[%s485 + $0x58] sm:$0xff]
        %v574 = vld [vmem:[%s485 + $0x60] sm:$0xff]
        %v575 = vld [vmem:[%s485 + $0x68] sm:$0xff]
        %v576 = vld [vmem:[%s485 + $0x70] sm:$0xff]
        %v577 = vld [vmem:[%s485 + $0x78] sm:$0xff]
        %v578 = vld [vmem:[%s485 + $0x80] sm:$0xff]
        %v579 = vld [vmem:[%s485 + $0x88] sm:$0xff]
        %v580 = vld [vmem:[%s485 + $0x90] sm:$0xff]
        %v581 = vld [vmem:[%s485 + $0x98] sm:$0xff]
        %v582 = vld [vmem:[%s485 + $0xa0] sm:$0xff]
        %v583 = vld [vmem:[%s485 + $0xa8] sm:$0xff]
        %v584 = vld [vmem:[%s485 + $0xb0] sm:$0xff]
        %v585 = vld [vmem:[%s485 + $0xb8] sm:$0xff]
        %v586 = vld [vmem:[%s485 + $0xc0] sm:$0xff]
        %v587 = vld [vmem:[%s485 + $0xc8] sm:$0xff]
        %v588 = vld [vmem:[%s485 + $0xd0] sm:$0xff]
        %v589 = vld [vmem:[%s485 + $0xd8] sm:$0xff]
        %v590 = vld [vmem:[%s485 + $0xe0] sm:$0xff]
        %v591 = vld [vmem:[%s485 + $0xe8] sm:$0xff]
        %v592 = vld [vmem:[%s485 + $0xf0] sm:$0xff]
        %v593 = vld [vmem:[%s485 + $0xf8] sm:$0xff]
        %v594 = vld [vmem:[%s485 + $0x100] sm:$0xff]
        %v595 = vld [vmem:[%s485 + $0x108] sm:$0xff]
        %v596 = vld [vmem:[%s485 + $0x110] sm:$0xff]
        %v597 = vld [vmem:[%s485 + $0x118] sm:$0xff]
        %v598 = vld [vmem:[%s485 + $0x120] sm:$0xff]
        %v599 = vld [vmem:[%s485 + $0x128] sm:$0xff]
        %v600 = vld [vmem:[%s485 + $0x130] sm:$0xff]
        %v601 = vld [vmem:[%s485 + $0x138] sm:$0xff]
        %v602 = vld [vmem:[%s485 + $0x140] sm:$0xff]
        %v603 = vld [vmem:[%s485 + $0x148] sm:$0xff]
        %v604 = vld [vmem:[%s485 + $0x150] sm:$0xff]
        %v605 = vld [vmem:[%s485 + $0x158] sm:$0xff]
        %v606 = vld [vmem:[%s485 + $0x160] sm:$0xff]
        %v607 = vld [vmem:[%s485 + $0x168] sm:$0xff]
        %v608 = vld [vmem:[%s485 + $0x170] sm:$0xff]
        %v609 = vld [vmem:[%s485 + $0x178] sm:$0xff]
        %v610 = vld [vmem:[%s485 + $0x180] sm:$0xff]
        %v611 = vld [vmem:[%s485 + $0x188] sm:$0xff]
        %v612 = vld [vmem:[%s485 + $0x190] sm:$0xff]
        %v613 = vld [vmem:[%s485 + $0x198] sm:$0xff]
        %v614 = vld [vmem:[%s485 + $0x1a0] sm:$0xff]
        %v615 = vld [vmem:[%s485 + $0x1a8] sm:$0xff]
        %v616 = vld [vmem:[%s485 + $0x1b0] sm:$0xff]
        %v617 = vld [vmem:[%s485 + $0x1b8] sm:$0xff]
        %v618 = vld [vmem:[%s485 + $0x1c0] sm:$0xff]
        %v619 = vld [vmem:[%s485 + $0x1c8] sm:$0xff]
        %v620 = vld [vmem:[%s485 + $0x1d0] sm:$0xff]
        %v621 = vld [vmem:[%s485 + $0x1d8] sm:$0xff]
        %v622 = vld [vmem:[%s485 + $0x1e0] sm:$0xff]
        %v623 = vld [vmem:[%s485 + $0x1e8] sm:$0xff]
        %v624 = vld [vmem:[%s485 + $0x1f0] sm:$0xff]
        %v625 = vld [vmem:[%s485 + $0x1f8] sm:$0xff]
        %v626 = vld [vmem:[%s485 + $0x200] sm:$0xff]
        %v627 = vld [vmem:[%s485 + $0x208] sm:$0xff]
        %v628 = vld [vmem:[%s485 + $0x210] sm:$0xff]
        %v629 = vld [vmem:[%s485 + $0x218] sm:$0xff]
        %v630 = vld [vmem:[%s485 + $0x220] sm:$0xff]
        %v631 = vld [vmem:[%s485 + $0x228] sm:$0xff]
        %v632 = vld [vmem:[%s485 + $0x230] sm:$0xff]
        %v633 = vld [vmem:[%s485 + $0x238] sm:$0xff]
        %v634 = vld [vmem:[%s485 + $0x240] sm:$0xff]
        %v635 = vld [vmem:[%s485 + $0x248] sm:$0xff]
        %v636 = vld [vmem:[%s485 + $0x250] sm:$0xff]
        %v637 = vld [vmem:[%s485 + $0x258] sm:$0xff]
        %v638 = vld [vmem:[%s485 + $0x260] sm:$0xff]
        %v639 = vld [vmem:[%s485 + $0x268] sm:$0xff]
        %v640 = vld [vmem:[%s485 + $0x270] sm:$0xff]
        %v641 = vld [vmem:[%s485 + $0x278] sm:$0xff]
        %v642 = vld [vmem:[%s485 + $0x280] sm:$0xff]
        %v643 = vld [vmem:[%s485 + $0x288] sm:$0xff]
        %v644 = vld [vmem:[%s485 + $0x290] sm:$0xff]
        %v645 = vld [vmem:[%s485 + $0x298] sm:$0xff]
        %v646 = vld [vmem:[%s485 + $0x2a0] sm:$0xff]
        %v647 = vld [vmem:[%s485 + $0x2a8] sm:$0xff]
        %v648 = vld [vmem:[%s485 + $0x2b0] sm:$0xff]
        %v649 = vld [vmem:[%s485 + $0x2b8] sm:$0xff]
        %v650 = vld [vmem:[%s485 + $0x2c0] sm:$0xff]
        %v651 = vld [vmem:[%s485 + $0x2c8] sm:$0xff]
        %v652 = vld [vmem:[%s485 + $0x2d0] sm:$0xff]
        %v653 = vld [vmem:[%s485 + $0x2d8] sm:$0xff]
        %v654 = vld [vmem:[%s485 + $0x2e0] sm:$0xff]
        %v655 = vld [vmem:[%s485 + $0x2e8] sm:$0xff]
        %v656 = vld [vmem:[%s485 + $0x2f0] sm:$0xff]
        %v657 = vld [vmem:[%s485 + $0x2f8] sm:$0xff]
        %v658 = vld [vmem:[%s485 + $0x300] sm:$0xff]
        %v659 = vld [vmem:[%s485 + $0x308] sm:$0xff]
        %v660 = vld [vmem:[%s485 + $0x310] sm:$0xff]
        %v661 = vld [vmem:[%s485 + $0x318] sm:$0xff]
        %v662 = vld [vmem:[%s485 + $0x320] sm:$0xff]
        %v663 = vld [vmem:[%s485 + $0x328] sm:$0xff]
        %v664 = vld [vmem:[%s485 + $0x330] sm:$0xff]
        %v665 = vld [vmem:[%s485 + $0x338] sm:$0xff]
        %v666 = vld [vmem:[%s485 + $0x340] sm:$0xff]
        %v667 = vld [vmem:[%s485 + $0x348] sm:$0xff]
        %v668 = vld [vmem:[%s485 + $0x350] sm:$0xff]
        %v669 = vld [vmem:[%s485 + $0x358] sm:$0xff]
        %v670 = vld [vmem:[%s485 + $0x360] sm:$0xff]
        %v671 = vld [vmem:[%s485 + $0x368] sm:$0xff]
        %v672 = vld [vmem:[%s485 + $0x370] sm:$0xff]
        %v673 = vld [vmem:[%s485 + $0x378] sm:$0xff]
        %v674 = vld [vmem:[%s485 + $0x380] sm:$0xff]
        %v675 = vld [vmem:[%s485 + $0x388] sm:$0xff]
        %v676 = vld [vmem:[%s485 + $0x390] sm:$0xff]
        %v677 = vld [vmem:[%s485 + $0x398] sm:$0xff]
        %v678 = vld [vmem:[%s485 + $0x3a0] sm:$0xff]
        %v679 = vld [vmem:[%s485 + $0x3a8] sm:$0xff]
        %v680 = vld [vmem:[%s485 + $0x3b0] sm:$0xff]
        %v681 = vld [vmem:[%s485 + $0x3b8] sm:$0xff]
        %v682 = vld [vmem:[%s485 + $0x3c0] sm:$0xff]
        %v683 = vld [vmem:[%s485 + $0x3c8] sm:$0xff]
        %v684 = vld [vmem:[%s485 + $0x3d0] sm:$0xff]
        %v685 = vld [vmem:[%s485 + $0x3d8] sm:$0xff]
        %v686 = vld [vmem:[%s485 + $0x3e0] sm:$0xff]
        %v687 = vld [vmem:[%s485 + $0x3e8] sm:$0xff]
        %v688 = vld [vmem:[%s485 + $0x3f0] sm:$0xff]
        %v689 = vld [vmem:[%s485 + $0x3f8] sm:$0xff]
        %v691 = vunpack.c.l.b16 %v561
        %v692 = vunpack.c.h.b16 %v561
        %v693 = vpack.c.b16 %v691, %v691
        %v694 = vpack.c.b16 %v692, %v692
        %v825 = vunpack.c.l.b16 %v562
        %v826 = vunpack.c.h.b16 %v562
        %v827 = vunpack.c.l.b16 %v563
        %v828 = vunpack.c.h.b16 %v563
        %v829 = vunpack.c.l.b16 %v564
        %v830 = vunpack.c.h.b16 %v564
        %v831 = vunpack.c.l.b16 %v565
        %v832 = vunpack.c.h.b16 %v565
        %v833 = vunpack.c.l.b16 %v566
        %v834 = vunpack.c.h.b16 %v566
        %v835 = vunpack.c.l.b16 %v567
        %v836 = vunpack.c.h.b16 %v567
        %v837 = vunpack.c.l.b16 %v568
        %v838 = vunpack.c.h.b16 %v568
        %v839 = vunpack.c.l.b16 %v569
        %v840 = vunpack.c.h.b16 %v569
        %v841 = vunpack.c.l.b16 %v570
        %v842 = vunpack.c.h.b16 %v570
        %v843 = vunpack.c.l.b16 %v571
        %v844 = vunpack.c.h.b16 %v571
        %v845 = vunpack.c.l.b16 %v572
        %v846 = vunpack.c.h.b16 %v572
        %v847 = vunpack.c.l.b16 %v573
        %v848 = vunpack.c.h.b16 %v573
        %v849 = vunpack.c.l.b16 %v574
        %v850 = vunpack.c.h.b16 %v574
        %v851 = vunpack.c.l.b16 %v575
        %v852 = vunpack.c.h.b16 %v575
        %v853 = vunpack.c.l.b16 %v576
        %v854 = vunpack.c.h.b16 %v576
        %v855 = vunpack.c.l.b16 %v577
        %v856 = vunpack.c.h.b16 %v577
        %v857 = vunpack.c.l.b16 %v578
        %v858 = vunpack.c.h.b16 %v578
        %v859 = vunpack.c.l.b16 %v579
        %v860 = vunpack.c.h.b16 %v579
        %v861 = vunpack.c.l.b16 %v580
        %v862 = vunpack.c.h.b16 %v580
        %v863 = vunpack.c.l.b16 %v581
        %v864 = vunpack.c.h.b16 %v581
        %v865 = vunpack.c.l.b16 %v582
        %v866 = vunpack.c.h.b16 %v582
        %v867 = vunpack.c.l.b16 %v583
        %v868 = vunpack.c.h.b16 %v583
        %v869 = vunpack.c.l.b16 %v584
        %v870 = vunpack.c.h.b16 %v584
        %v871 = vunpack.c.l.b16 %v585
        %v872 = vunpack.c.h.b16 %v585
        %v873 = vunpack.c.l.b16 %v586
        %v874 = vunpack.c.h.b16 %v586
        %v875 = vunpack.c.l.b16 %v587
        %v876 = vunpack.c.h.b16 %v587
        %v877 = vunpack.c.l.b16 %v588
        %v878 = vunpack.c.h.b16 %v588
        %v879 = vunpack.c.l.b16 %v589
        %v880 = vunpack.c.h.b16 %v589
        %v881 = vunpack.c.l.b16 %v590
        %v882 = vunpack.c.h.b16 %v590
        %v883 = vunpack.c.l.b16 %v591
        %v884 = vunpack.c.h.b16 %v591
        %v885 = vunpack.c.l.b16 %v592
        %v886 = vunpack.c.h.b16 %v592
        %v887 = vunpack.c.l.b16 %v593
        %v888 = vunpack.c.h.b16 %v593
        %v889 = vunpack.c.l.b16 %v594
        %v890 = vunpack.c.h.b16 %v594
        %v891 = vunpack.c.l.b16 %v595
        %v892 = vunpack.c.h.b16 %v595
        %v893 = vunpack.c.l.b16 %v596
        %v894 = vunpack.c.h.b16 %v596
        %v895 = vunpack.c.l.b16 %v597
        %v896 = vunpack.c.h.b16 %v597
        %v897 = vunpack.c.l.b16 %v598
        %v898 = vunpack.c.h.b16 %v598
        %v899 = vunpack.c.l.b16 %v599
        %v900 = vunpack.c.h.b16 %v599
        %v901 = vunpack.c.l.b16 %v600
        %v902 = vunpack.c.h.b16 %v600
        %v903 = vunpack.c.l.b16 %v601
        %v904 = vunpack.c.h.b16 %v601
        %v905 = vunpack.c.l.b16 %v602
        %v906 = vunpack.c.h.b16 %v602
        %v907 = vunpack.c.l.b16 %v603
        %v908 = vunpack.c.h.b16 %v603
        %v909 = vunpack.c.l.b16 %v604
        %v910 = vunpack.c.h.b16 %v604
        %v911 = vunpack.c.l.b16 %v605
        %v912 = vunpack.c.h.b16 %v605
        %v913 = vunpack.c.l.b16 %v606
        %v914 = vunpack.c.h.b16 %v606
        %v915 = vunpack.c.l.b16 %v607
        %v916 = vunpack.c.h.b16 %v607
        %v917 = vunpack.c.l.b16 %v608
        %v918 = vunpack.c.h.b16 %v608
        %v919 = vunpack.c.l.b16 %v609
        %v920 = vunpack.c.h.b16 %v609
        %v921 = vunpack.c.l.b16 %v610
        %v922 = vunpack.c.h.b16 %v610
        %v923 = vunpack.c.l.b16 %v611
        %v924 = vunpack.c.h.b16 %v611
        %v925 = vunpack.c.l.b16 %v612
        %v926 = vunpack.c.h.b16 %v612
        %v927 = vunpack.c.l.b16 %v613
        %v928 = vunpack.c.h.b16 %v613
        %v929 = vunpack.c.l.b16 %v614
        %v930 = vunpack.c.h.b16 %v614
        %v931 = vunpack.c.l.b16 %v615
        %v932 = vunpack.c.h.b16 %v615
        %v933 = vunpack.c.l.b16 %v616
        %v934 = vunpack.c.h.b16 %v616
        %v935 = vunpack.c.l.b16 %v617
        %v936 = vunpack.c.h.b16 %v617
        %v937 = vunpack.c.l.b16 %v618
        %v938 = vunpack.c.h.b16 %v618
        %v939 = vunpack.c.l.b16 %v619
        %v940 = vunpack.c.h.b16 %v619
        %v941 = vunpack.c.l.b16 %v620
        %v942 = vunpack.c.h.b16 %v620
        %v943 = vunpack.c.l.b16 %v621
        %v944 = vunpack.c.h.b16 %v621
        %v945 = vunpack.c.l.b16 %v622
        %v946 = vunpack.c.h.b16 %v622
        %v947 = vunpack.c.l.b16 %v623
        %v948 = vunpack.c.h.b16 %v623
        %v949 = vunpack.c.l.b16 %v624
        %v950 = vunpack.c.h.b16 %v624
        %v951 = vunpack.c.l.b16 %v625
        %v952 = vunpack.c.h.b16 %v625
        %v953 = vunpack.c.l.b16 %v626
        %v954 = vunpack.c.h.b16 %v626
        %v955 = vunpack.c.l.b16 %v627
        %v956 = vunpack.c.h.b16 %v627
        %v957 = vunpack.c.l.b16 %v628
        %v958 = vunpack.c.h.b16 %v628
        %v959 = vunpack.c.l.b16 %v629
        %v960 = vunpack.c.h.b16 %v629
        %v961 = vunpack.c.l.b16 %v630
        %v962 = vunpack.c.h.b16 %v630
        %v963 = vunpack.c.l.b16 %v631
        %v964 = vunpack.c.h.b16 %v631
        %v965 = vunpack.c.l.b16 %v632
        %v966 = vunpack.c.h.b16 %v632
        %v967 = vunpack.c.l.b16 %v633
        %v968 = vunpack.c.h.b16 %v633
        %v969 = vunpack.c.l.b16 %v634
        %v970 = vunpack.c.h.b16 %v634
        %v971 = vunpack.c.l.b16 %v635
        %v972 = vunpack.c.h.b16 %v635
        %v973 = vunpack.c.l.b16 %v636
        %v974 = vunpack.c.h.b16 %v636
        %v975 = vunpack.c.l.b16 %v637
        %v976 = vunpack.c.h.b16 %v637
        %v977 = vunpack.c.l.b16 %v638
        %v978 = vunpack.c.h.b16 %v638
        %v979 = vunpack.c.l.b16 %v639
        %v980 = vunpack.c.h.b16 %v639
        %v981 = vunpack.c.l.b16 %v640
        %v982 = vunpack.c.h.b16 %v640
        %v983 = vunpack.c.l.b16 %v641
        %v984 = vunpack.c.h.b16 %v641
        %v985 = vunpack.c.l.b16 %v642
        %v986 = vunpack.c.h.b16 %v642
        %v987 = vunpack.c.l.b16 %v643
        %v988 = vunpack.c.h.b16 %v643
        %v989 = vunpack.c.l.b16 %v644
        %v990 = vunpack.c.h.b16 %v644
        %v991 = vunpack.c.l.b16 %v645
        %v992 = vunpack.c.h.b16 %v645
        %v993 = vunpack.c.l.b16 %v646
        %v994 = vunpack.c.h.b16 %v646
        %v995 = vunpack.c.l.b16 %v647
        %v996 = vunpack.c.h.b16 %v647
        %v997 = vunpack.c.l.b16 %v648
        %v998 = vunpack.c.h.b16 %v648
        %v999 = vunpack.c.l.b16 %v649
        %v1000 = vunpack.c.h.b16 %v649
        %v1001 = vunpack.c.l.b16 %v650
        %v1002 = vunpack.c.h.b16 %v650
        %v1003 = vunpack.c.l.b16 %v651
        %v1004 = vunpack.c.h.b16 %v651
        %v1005 = vunpack.c.l.b16 %v652
        %v1006 = vunpack.c.h.b16 %v652
        %v1007 = vunpack.c.l.b16 %v653
        %v1008 = vunpack.c.h.b16 %v653
        %v1009 = vunpack.c.l.b16 %v654
        %v1010 = vunpack.c.h.b16 %v654
        %v1011 = vunpack.c.l.b16 %v655
        %v1012 = vunpack.c.h.b16 %v655
        %v1013 = vunpack.c.l.b16 %v656
        %v1014 = vunpack.c.h.b16 %v656
        %v1015 = vunpack.c.l.b16 %v657
        %v1016 = vunpack.c.h.b16 %v657
        %v1017 = vunpack.c.l.b16 %v658
        %v1018 = vunpack.c.h.b16 %v658
        %v1019 = vunpack.c.l.b16 %v659
        %v1020 = vunpack.c.h.b16 %v659
        %v1021 = vunpack.c.l.b16 %v660
        %v1022 = vunpack.c.h.b16 %v660
        %v1023 = vunpack.c.l.b16 %v661
        %v1024 = vunpack.c.h.b16 %v661
        %v1025 = vunpack.c.l.b16 %v662
        %v1026 = vunpack.c.h.b16 %v662
        %v1027 = vunpack.c.l.b16 %v663
        %v1028 = vunpack.c.h.b16 %v663
        %v1029 = vunpack.c.l.b16 %v664
        %v1030 = vunpack.c.h.b16 %v664
        %v1031 = vunpack.c.l.b16 %v665
        %v1032 = vunpack.c.h.b16 %v665
        %v1033 = vunpack.c.l.b16 %v666
        %v1034 = vunpack.c.h.b16 %v666
        %v1035 = vunpack.c.l.b16 %v667
        %v1036 = vunpack.c.h.b16 %v667
        %v1037 = vunpack.c.l.b16 %v668
        %v1038 = vunpack.c.h.b16 %v668
        %v1039 = vunpack.c.l.b16 %v669
        %v1040 = vunpack.c.h.b16 %v669
        %v1041 = vunpack.c.l.b16 %v670
        %v1042 = vunpack.c.h.b16 %v670
        %v1043 = vunpack.c.l.b16 %v671
        %v1044 = vunpack.c.h.b16 %v671
        %v1045 = vunpack.c.l.b16 %v672
        %v1046 = vunpack.c.h.b16 %v672
        %v1047 = vunpack.c.l.b16 %v673
        %v1048 = vunpack.c.h.b16 %v673
        %v1049 = vunpack.c.l.b16 %v674
        %v1050 = vunpack.c.h.b16 %v674
        %v1051 = vunpack.c.l.b16 %v675
        %v1052 = vunpack.c.h.b16 %v675
        %v1053 = vunpack.c.l.b16 %v676
        %v1054 = vunpack.c.h.b16 %v676
        %v1055 = vunpack.c.l.b16 %v677
        %v1056 = vunpack.c.h.b16 %v677
        %v1057 = vunpack.c.l.b16 %v678
        %v1058 = vunpack.c.h.b16 %v678
        %v1059 = vunpack.c.l.b16 %v679
        %v1060 = vunpack.c.h.b16 %v679
        %v1061 = vunpack.c.l.b16 %v680
        %v1062 = vunpack.c.h.b16 %v680
        %v1063 = vunpack.c.l.b16 %v681
        %v1064 = vunpack.c.h.b16 %v681
        %v1065 = vunpack.c.l.b16 %v682
        %v1066 = vunpack.c.h.b16 %v682
        %v1067 = vunpack.c.l.b16 %v683
        %v1068 = vunpack.c.h.b16 %v683
        %v1069 = vunpack.c.l.b16 %v684
        %v1070 = vunpack.c.h.b16 %v684
        %v1071 = vunpack.c.l.b16 %v685
        %v1072 = vunpack.c.h.b16 %v685
        %v1073 = vunpack.c.l.b16 %v686
        %v1074 = vunpack.c.h.b16 %v686
        %v1075 = vunpack.c.l.b16 %v687
        %v1076 = vunpack.c.h.b16 %v687
        %v1077 = vunpack.c.l.b16 %v688
        %v1078 = vunpack.c.h.b16 %v688
        %v1079 = vunpack.c.l.b16 %v689
        %v1080 = vunpack.c.h.b16 %v689
        %v1081 = vpack.c.b16 %v833, %v825
        %v1082 = vpack.c.b16 %v834, %v826
        %v1083 = vpack.c.b16 %v835, %v827
        %v1084 = vpack.c.b16 %v836, %v828
        %v1085 = vpack.c.b16 %v837, %v829
        %v1086 = vpack.c.b16 %v838, %v830
        %v1087 = vpack.c.b16 %v839, %v831
        %v1088 = vpack.c.b16 %v840, %v832
        %v1089 = vpack.c.b16 %v849, %v841
        %v1090 = vpack.c.b16 %v850, %v842
        %v1091 = vpack.c.b16 %v851, %v843
        %v1092 = vpack.c.b16 %v852, %v844
        %v1093 = vpack.c.b16 %v853, %v845
        %v1094 = vpack.c.b16 %v854, %v846
        %v1095 = vpack.c.b16 %v855, %v847
        %v1096 = vpack.c.b16 %v856, %v848
        %v1097 = vpack.c.b16 %v865, %v857
        %v1098 = vpack.c.b16 %v866, %v858
        %v1099 = vpack.c.b16 %v867, %v859
        %v1100 = vpack.c.b16 %v868, %v860
        %v1101 = vpack.c.b16 %v869, %v861
        %v1102 = vpack.c.b16 %v870, %v862
        %v1103 = vpack.c.b16 %v871, %v863
        %v1104 = vpack.c.b16 %v872, %v864
        %v1105 = vpack.c.b16 %v881, %v873
        %v1106 = vpack.c.b16 %v882, %v874
        %v1107 = vpack.c.b16 %v883, %v875
        %v1108 = vpack.c.b16 %v884, %v876
        %v1109 = vpack.c.b16 %v885, %v877
        %v1110 = vpack.c.b16 %v886, %v878
        %v1111 = vpack.c.b16 %v887, %v879
        %v1112 = vpack.c.b16 %v888, %v880
        %v1113 = vpack.c.b16 %v897, %v889
        %v1114 = vpack.c.b16 %v898, %v890
        %v1115 = vpack.c.b16 %v899, %v891
        %v1116 = vpack.c.b16 %v900, %v892
        %v1117 = vpack.c.b16 %v901, %v893
        %v1118 = vpack.c.b16 %v902, %v894
        %v1119 = vpack.c.b16 %v903, %v895
        %v1120 = vpack.c.b16 %v904, %v896
        %v1121 = vpack.c.b16 %v913, %v905
        %v1122 = vpack.c.b16 %v914, %v906
        %v1123 = vpack.c.b16 %v915, %v907
        %v1124 = vpack.c.b16 %v916, %v908
        %v1125 = vpack.c.b16 %v917, %v909
        %v1126 = vpack.c.b16 %v918, %v910
        %v1127 = vpack.c.b16 %v919, %v911
        %v1128 = vpack.c.b16 %v920, %v912
        %v1129 = vpack.c.b16 %v929, %v921
        %v1130 = vpack.c.b16 %v930, %v922
        %v1131 = vpack.c.b16 %v931, %v923
        %v1132 = vpack.c.b16 %v932, %v924
        %v1133 = vpack.c.b16 %v933, %v925
        %v1134 = vpack.c.b16 %v934, %v926
        %v1135 = vpack.c.b16 %v935, %v927
        %v1136 = vpack.c.b16 %v936, %v928
        %v1137 = vpack.c.b16 %v945, %v937
        %v1138 = vpack.c.b16 %v946, %v938
        %v1139 = vpack.c.b16 %v947, %v939
        %v1140 = vpack.c.b16 %v948, %v940
        %v1141 = vpack.c.b16 %v949, %v941
        %v1142 = vpack.c.b16 %v950, %v942
        %v1143 = vpack.c.b16 %v951, %v943
        %v1144 = vpack.c.b16 %v952, %v944
        %v1145 = vpack.c.b16 %v961, %v953
        %v1146 = vpack.c.b16 %v962, %v954
        %v1147 = vpack.c.b16 %v963, %v955
        %v1148 = vpack.c.b16 %v964, %v956
        %v1149 = vpack.c.b16 %v965, %v957
        %v1150 = vpack.c.b16 %v966, %v958
        %v1151 = vpack.c.b16 %v967, %v959
        %v1152 = vpack.c.b16 %v968, %v960
        %v1153 = vpack.c.b16 %v977, %v969
        %v1154 = vpack.c.b16 %v978, %v970
        %v1155 = vpack.c.b16 %v979, %v971
        %v1156 = vpack.c.b16 %v980, %v972
        %v1157 = vpack.c.b16 %v981, %v973
        %v1158 = vpack.c.b16 %v982, %v974
        %v1159 = vpack.c.b16 %v983, %v975
        %v1160 = vpack.c.b16 %v984, %v976
        %v1161 = vpack.c.b16 %v993, %v985
        %v1162 = vpack.c.b16 %v994, %v986
        %v1163 = vpack.c.b16 %v995, %v987
        %v1164 = vpack.c.b16 %v996, %v988
        %v1165 = vpack.c.b16 %v997, %v989
        %v1166 = vpack.c.b16 %v998, %v990
        %v1167 = vpack.c.b16 %v999, %v991
        %v1168 = vpack.c.b16 %v1000, %v992
        %v1169 = vpack.c.b16 %v1009, %v1001
        %v1170 = vpack.c.b16 %v1010, %v1002
        %v1171 = vpack.c.b16 %v1011, %v1003
        %v1172 = vpack.c.b16 %v1012, %v1004
        %v1173 = vpack.c.b16 %v1013, %v1005
        %v1174 = vpack.c.b16 %v1014, %v1006
        %v1175 = vpack.c.b16 %v1015, %v1007
        %v1176 = vpack.c.b16 %v1016, %v1008
        %v1177 = vpack.c.b16 %v1025, %v1017
        %v1178 = vpack.c.b16 %v1026, %v1018
        %v1179 = vpack.c.b16 %v1027, %v1019
        %v1180 = vpack.c.b16 %v1028, %v1020
        %v1181 = vpack.c.b16 %v1029, %v1021
        %v1182 = vpack.c.b16 %v1030, %v1022
        %v1183 = vpack.c.b16 %v1031, %v1023
        %v1184 = vpack.c.b16 %v1032, %v1024
        %v1185 = vpack.c.b16 %v1041, %v1033
        %v1186 = vpack.c.b16 %v1042, %v1034
        %v1187 = vpack.c.b16 %v1043, %v1035
        %v1188 = vpack.c.b16 %v1044, %v1036
        %v1189 = vpack.c.b16 %v1045, %v1037
        %v1190 = vpack.c.b16 %v1046, %v1038
        %v1191 = vpack.c.b16 %v1047, %v1039
        %v1192 = vpack.c.b16 %v1048, %v1040
        %v1193 = vpack.c.b16 %v1057, %v1049
        %v1194 = vpack.c.b16 %v1058, %v1050
        %v1195 = vpack.c.b16 %v1059, %v1051
        %v1196 = vpack.c.b16 %v1060, %v1052
        %v1197 = vpack.c.b16 %v1061, %v1053
        %v1198 = vpack.c.b16 %v1062, %v1054
        %v1199 = vpack.c.b16 %v1063, %v1055
        %v1200 = vpack.c.b16 %v1064, %v1056
        %v1201 = vpack.c.b16 %v1073, %v1065
        %v1202 = vpack.c.b16 %v1074, %v1066
        %v1203 = vpack.c.b16 %v1075, %v1067
        %v1204 = vpack.c.b16 %v1076, %v1068
        %v1205 = vpack.c.b16 %v1077, %v1069
        %v1206 = vpack.c.b16 %v1078, %v1070
        %v1207 = vpack.c.b16 %v1079, %v1071
        %v1208 = vpack.c.b16 %v1080, %v1072
        %1337 = vmatprep.subr.bf16.mxu0 %v1082
        %1338 = vmatpush1.bf16.msra.mxu0 %v1081
        %1339 = vmatprep.subr.bf16.mxu0 %v1090
        %1340 = vmatpush1.bf16.msra.mxu0 %v1089
        %1341 = vmatprep.subr.bf16.mxu0 %v1098
        %1342 = vmatpush1.bf16.msra.mxu0 %v1097
        %1343 = vmatprep.subr.bf16.mxu0 %v1106
        %1344 = vmatpush1.bf16.msra.mxu0 %v1105
        %1345 = vmatprep.subr.bf16.mxu0 %v1114
        %1346 = vmatpush1.bf16.msra.mxu0 %v1113
        %1347 = vmatprep.subr.bf16.mxu0 %v1122
        %1348 = vmatpush1.bf16.msra.mxu0 %v1121
        %1349 = vmatprep.subr.bf16.mxu0 %v1130
        %1350 = vmatpush1.bf16.msra.mxu0 %v1129
        %1351 = vmatprep.subr.bf16.mxu0 %v1138
        %1352 = vmatpush1.bf16.msra.mxu0 %v1137
        %1353 = vmatprep.subr.bf16.mxu0 %v1146
        %1354 = vmatpush1.bf16.msra.mxu0 %v1145
        %1355 = vmatprep.subr.bf16.mxu0 %v1154
        %1356 = vmatpush1.bf16.msra.mxu0 %v1153
        %1357 = vmatprep.subr.bf16.mxu0 %v1162
        %1358 = vmatpush1.bf16.msra.mxu0 %v1161
        %1359 = vmatprep.subr.bf16.mxu0 %v1170
        %1360 = vmatpush1.bf16.msra.mxu0 %v1169
        %1361 = vmatprep.subr.bf16.mxu0 %v1178
        %1362 = vmatpush1.bf16.msra.mxu0 %v1177
        %1363 = vmatprep.subr.bf16.mxu0 %v1186
        %1364 = vmatpush1.bf16.msra.mxu0 %v1185
        %1365 = vmatprep.subr.bf16.mxu0 %v1194
        %1366 = vmatpush1.bf16.msra.mxu0 %v1193
        %1367 = vmatprep.subr.bf16.mxu0 %v1202
        %1368 = vmatpush1.bf16.msra.mxu0 %v1201
        %1369 = vmatprep.mubr.bf16.mxu0 %v694
        %1370 = vmatmul.mubr.bf16.gmra.mrb[0].mxu0 %v693
        %v1371 = vpop.f32.mrb[0].mxu0
        %v1372 = vadd.f32 0.0, %v1371
        %v1373 = vpop.f32.mrb[0].mxu0
        %v1374 = vadd.f32 0.0, %v1373
        %v1375 = vpop.f32.mrb[0].mxu0
        %v1376 = vpop.f32.mrb[0].mxu0
        %1377 = vdwg.mxu0
        %1378 = vmatprep.subr.bf16.mxu0 %v1084
        %1379 = vmatpush1.bf16.msra.mxu0 %v1083
        %1380 = vmatprep.subr.bf16.mxu0 %v1092
        %1381 = vmatpush1.bf16.msra.mxu0 %v1091
        %1382 = vmatprep.subr.bf16.mxu0 %v1100
        %1383 = vmatpush1.bf16.msra.mxu0 %v1099
        %1384 = vmatprep.subr.bf16.mxu0 %v1108
        %1385 = vmatpush1.bf16.msra.mxu0 %v1107
        %1386 = vmatprep.subr.bf16.mxu0 %v1116
        %1387 = vmatpush1.bf16.msra.mxu0 %v1115
        %1388 = vmatprep.subr.bf16.mxu0 %v1124
        %1389 = vmatpush1.bf16.msra.mxu0 %v1123
        %1390 = vmatprep.subr.bf16.mxu0 %v1132
        %1391 = vmatpush1.bf16.msra.mxu0 %v1131
        %1392 = vmatprep.subr.bf16.mxu0 %v1140
        %1393 = vmatpush1.bf16.msra.mxu0 %v1139
        %1394 = vmatprep.subr.bf16.mxu0 %v1148
        %1395 = vmatpush1.bf16.msra.mxu0 %v1147
        %1396 = vmatprep.subr.bf16.mxu0 %v1156
        %1397 = vmatpush1.bf16.msra.mxu0 %v1155
        %1398 = vmatprep.subr.bf16.mxu0 %v1164
        %1399 = vmatpush1.bf16.msra.mxu0 %v1163
        %1400 = vmatprep.subr.bf16.mxu0 %v1172
        %1401 = vmatpush1.bf16.msra.mxu0 %v1171
        %1402 = vmatprep.subr.bf16.mxu0 %v1180
        %1403 = vmatpush1.bf16.msra.mxu0 %v1179
        %1404 = vmatprep.subr.bf16.mxu0 %v1188
        %1405 = vmatpush1.bf16.msra.mxu0 %v1187
        %1406 = vmatprep.subr.bf16.mxu0 %v1196
        %1407 = vmatpush1.bf16.msra.mxu0 %v1195
        %1408 = vmatprep.subr.bf16.mxu0 %v1204
        %1409 = vmatpush1.bf16.msra.mxu0 %v1203
        %1410 = vmatprep.mubr.bf16.mxu0 %v694
        %1411 = vmatmul.mubr.bf16.gmra.mrb[0].mxu0 %v693
        %v1412 = vpop.f32.mrb[0].mxu0
        %v1413 = vadd.f32 0.0, %v1412
        %v1414 = vpop.f32.mrb[0].mxu0
        %v1415 = vadd.f32 0.0, %v1414
        %v1416 = vpop.f32.mrb[0].mxu0
        %v1417 = vpop.f32.mrb[0].mxu0
        %1418 = vdwg.mxu0
        %1419 = vmatprep.subr.bf16.mxu0 %v1086
        %1420 = vmatpush1.bf16.msra.mxu0 %v1085
        %1421 = vmatprep.subr.bf16.mxu0 %v1094
        %1422 = vmatpush1.bf16.msra.mxu0 %v1093
        %1423 = vmatprep.subr.bf16.mxu0 %v1102
        %1424 = vmatpush1.bf16.msra.mxu0 %v1101
        %1425 = vmatprep.subr.bf16.mxu0 %v1110
        %1426 = vmatpush1.bf16.msra.mxu0 %v1109
        %1427 = vmatprep.subr.bf16.mxu0 %v1118
        %1428 = vmatpush1.bf16.msra.mxu0 %v1117
        %1429 = vmatprep.subr.bf16.mxu0 %v1126
        %1430 = vmatpush1.bf16.msra.mxu0 %v1125
        %1431 = vmatprep.subr.bf16.mxu0 %v1134
        %1432 = vmatpush1.bf16.msra.mxu0 %v1133
        %1433 = vmatprep.subr.bf16.mxu0 %v1142
        %1434 = vmatpush1.bf16.msra.mxu0 %v1141
        %1435 = vmatprep.subr.bf16.mxu0 %v1150
        %1436 = vmatpush1.bf16.msra.mxu0 %v1149
        %1437 = vmatprep.subr.bf16.mxu0 %v1158
        %1438 = vmatpush1.bf16.msra.mxu0 %v1157
        %1439 = vmatprep.subr.bf16.mxu0 %v1166
        %1440 = vmatpush1.bf16.msra.mxu0 %v1165
        %1441 = vmatprep.subr.bf16.mxu0 %v1174
        %1442 = vmatpush1.bf16.msra.mxu0 %v1173
        %1443 = vmatprep.subr.bf16.mxu0 %v1182
        %1444 = vmatpush1.bf16.msra.mxu0 %v1181
        %1445 = vmatprep.subr.bf16.mxu0 %v1190
        %1446 = vmatpush1.bf16.msra.mxu0 %v1189
        %1447 = vmatprep.subr.bf16.mxu0 %v1198
        %1448 = vmatpush1.bf16.msra.mxu0 %v1197
        %1449 = vmatprep.subr.bf16.mxu0 %v1206
        %1450 = vmatpush1.bf16.msra.mxu0 %v1205
        %1451 = vmatprep.mubr.bf16.mxu0 %v694
        %1452 = vmatmul.mubr.bf16.gmra.mrb[0].mxu0 %v693
        %v1453 = vpop.f32.mrb[0].mxu0
        %v1454 = vadd.f32 0.0, %v1453
        %v1455 = vpop.f32.mrb[0].mxu0
        %v1456 = vadd.f32 0.0, %v1455
        %v1457 = vpop.f32.mrb[0].mxu0
        %v1458 = vpop.f32.mrb[0].mxu0
        %1459 = vdwg.mxu0
        %1460 = vmatprep.subr.bf16.mxu0 %v1088
        %1461 = vmatpush1.bf16.msra.mxu0 %v1087
        %1462 = vmatprep.subr.bf16.mxu0 %v1096
        %1463 = vmatpush1.bf16.msra.mxu0 %v1095
        %1464 = vmatprep.subr.bf16.mxu0 %v1104
        %1465 = vmatpush1.bf16.msra.mxu0 %v1103
        %1466 = vmatprep.subr.bf16.mxu0 %v1112
        %1467 = vmatpush1.bf16.msra.mxu0 %v1111
        %1468 = vmatprep.subr.bf16.mxu0 %v1120
        %1469 = vmatpush1.bf16.msra.mxu0 %v1119
        %1470 = vmatprep.subr.bf16.mxu0 %v1128
        %1471 = vmatpush1.bf16.msra.mxu0 %v1127
        %1472 = vmatprep.subr.bf16.mxu0 %v1136
        %1473 = vmatpush1.bf16.msra.mxu0 %v1135
        %1474 = vmatprep.subr.bf16.mxu0 %v1144
        %1475 = vmatpush1.bf16.msra.mxu0 %v1143
        %1476 = vmatprep.subr.bf16.mxu0 %v1152
        %1477 = vmatpush1.bf16.msra.mxu0 %v1151
        %1478 = vmatprep.subr.bf16.mxu0 %v1160
        %1479 = vmatpush1.bf16.msra.mxu0 %v1159
        %1480 = vmatprep.subr.bf16.mxu0 %v1168
        %1481 = vmatpush1.bf16.msra.mxu0 %v1167
        %1482 = vmatprep.subr.bf16.mxu0 %v1176
        %1483 = vmatpush1.bf16.msra.mxu0 %v1175
        %1484 = vmatprep.subr.bf16.mxu0 %v1184
        %1485 = vmatpush1.bf16.msra.mxu0 %v1183
        %1486 = vmatprep.subr.bf16.mxu0 %v1192
        %1487 = vmatpush1.bf16.msra.mxu0 %v1191
        %1488 = vmatprep.subr.bf16.mxu0 %v1200
        %1489 = vmatpush1.bf16.msra.mxu0 %v1199
        %1490 = vmatprep.subr.bf16.mxu0 %v1208
        %1491 = vmatpush1.bf16.msra.mxu0 %v1207
        %1492 = vmatprep.mubr.bf16.mxu0 %v694
        %1493 = vmatmul.mubr.bf16.gmra.mrb[0].mxu0 %v693
        %v1494 = vpop.f32.mrb[0].mxu0
        %v1495 = vadd.f32 0.0, %v1494
        %v1496 = vpop.f32.mrb[0].mxu0
        %v1497 = vadd.f32 0.0, %v1496
        %v1498 = vpop.f32.mrb[0].mxu0
        %v1499 = vpop.f32.mrb[0].mxu0
        %1500 = vdwg.mxu0
        %v1501 = vadd.f32 %v553, %v1372
        %v1502 = vadd.f32 %v554, %v1374
        %v1503 = vadd.f32 %v555, %v1413
        %v1504 = vadd.f32 %v556, %v1415
        %v1505 = vadd.f32 %v557, %v1454
        %v1506 = vadd.f32 %v558, %v1456
        %v1507 = vadd.f32 %v559, %v1495
        %v1508 = vadd.f32 %v560, %v1497
        %1509 = vst [vmem:[#allocation2] sm:$0x3f] %v1501
        %1510 = vst [vmem:[#allocation2 + $0x8] sm:$0x3f] %v1502
        %1511 = vst [vmem:[#allocation2 + $0x10] sm:$0x3f] %v1503
        %1512 = vst [vmem:[#allocation2 + $0x18] sm:$0x3f] %v1504
        %1513 = vst [vmem:[#allocation2 + $0x20] sm:$0x3f] %v1505
        %1514 = vst [vmem:[#allocation2 + $0x28] sm:$0x3f] %v1506
        %1515 = vst [vmem:[#allocation2 + $0x30] sm:$0x3f] %v1507
        %1516 = vst [vmem:[#allocation2 + $0x38] sm:$0x3f] %v1508
        %p1517 = scmp.eq.s32.totalorder %s21, 2
        // Predicated region
        $region60: #{mixdcnn_forward.2} parent=50 // pred_check
          %p1518 = pneg %p1517
        $region61: #{mixdcnn_forward.2} parent=50 // pred_check_branch
          %1520 = sbr.rel (%p1518) target = $region63
        $region62: #{mixdcnn_forward.2} parent=50 // pred_region
          %v1521 = vld [vmem:[#allocation2] sm:$0x3f]
          %v1522 = vld [vmem:[#allocation2 + $0x8] sm:$0x3f]
          %v1523 = vld [vmem:[#allocation2 + $0x10] sm:$0x3f]
          %v1524 = vld [vmem:[#allocation2 + $0x18] sm:$0x3f]
          %v1525 = vld [vmem:[#allocation2 + $0x20] sm:$0x3f]
          %v1526 = vld [vmem:[#allocation2 + $0x28] sm:$0x3f]
          %v1527 = vld [vmem:[#allocation2 + $0x30] sm:$0x3f]
          %v1528 = vld [vmem:[#allocation2 + $0x38] sm:$0x3f]
          %v1529 = vmax.f32 %v1521, 0.0
          %v1530 = vmax.f32 %v1522, 0.0
          %v1531 = vmax.f32 %v1523, 0.0
          %v1532 = vmax.f32 %v1524, 0.0
          %v1533 = vmax.f32 %v1525, 0.0
          %v1534 = vmax.f32 %v1526, 0.0
          %v1535 = vmax.f32 %v1527, 0.0
          %v1536 = vmax.f32 %v1528, 0.0
          %vm1537 = vcmask 1045504
          %v1538 = vsel %vm1537, %v1529, -inf
          %v1539 = vsel %vm1537, %v1530, -inf
          %v1540 = vsel %vm1537, %v1531, -inf
          %v1541 = vsel %vm1537, %v1532, -inf
          %v1542 = vsel %vm1537, %v1533, -inf
          %v1543 = vmax.f32 %v1538, %v1542
          %v1544 = vsel %vm1537, %v1534, -inf
          %v1545 = vmax.f32 %v1539, %v1544
          %v1546 = vsel %vm1537, %v1535, -inf
          %v1547 = vmax.f32 %v1540, %v1546
          %v1548 = vsel %vm1537, %v1536, -inf
          %v1549 = vmax.f32 %v1541, %v1548
          %v1550 = vmax.f32 %v1543, %v1545
          %v1551 = vmax.f32 %v1547, %v1549
          %v1552 = vmax.f32 %v1550, %v1551
          %1553 = vmax.xlane.f32.xlu0 %v1552
          %v1554 = vpop.xlane.xlu0 %1553
          %vm1555 = vcmask 5120
          %1556 = vst.msk [vmem:[%s536] sm:$0x3f] %vm1555, %v1554
          %v1557 = vld [vmem:[%s531] sm:$0xff]
          %v1559 = vlaneseq
          %v1560 = vshrl.u32 %v1559, 7
          %v1561 = vsub.s32 0, %v1560
          %v1562 = vrot.slane %v1557, %v1561
          %v1563 = vlaneseq
          %v1564 = vshrl.u32 %v1563, 7
          %v1565 = vsub.s32 1, %v1564
          %v1566 = vrot.slane %v1557, %v1565
          %v1567 = vlaneseq
          %v1568 = vshrl.u32 %v1567, 7
          %v1569 = vsub.s32 2, %v1568
          %v1570 = vrot.slane %v1557, %v1569
          %v1571 = vlaneseq
          %v1572 = vshrl.u32 %v1571, 7
          %v1573 = vsub.s32 3, %v1572
          %v1574 = vrot.slane %v1557, %v1573
          %v1575 = vlaneseq
          %v1576 = vshrl.u32 %v1575, 7
          %v1577 = vsub.s32 4, %v1576
          %v1578 = vrot.slane %v1557, %v1577
          %v1579 = vlaneseq
          %v1580 = vshrl.u32 %v1579, 7
          %v1581 = vsub.s32 5, %v1580
          %v1582 = vrot.slane %v1557, %v1581
          %v1583 = vlaneseq
          %v1584 = vshrl.u32 %v1583, 7
          %v1585 = vsub.s32 6, %v1584
          %v1586 = vrot.slane %v1557, %v1585
          %v1587 = vlaneseq
          %v1588 = vshrl.u32 %v1587, 7
          %v1589 = vsub.s32 7, %v1588
          %v1590 = vrot.slane %v1557, %v1589
          %v1599 = vmul.f32 %v1529, %v1562
          %v1600 = vmul.f32 %v1530, %v1566
          %v1601 = vmul.f32 %v1531, %v1570
          %v1602 = vmul.f32 %v1532, %v1574
          %v1603 = vmul.f32 %v1533, %v1578
          %v1604 = vmul.f32 %v1534, %v1582
          %v1605 = vmul.f32 %v1535, %v1586
          %v1606 = vmul.f32 %v1536, %v1590
          %v1607 = vsel %vm1537, %v1599, 0.0
          %v1608 = vsel %vm1537, %v1600, 0.0
          %v1609 = vadd.f32 %v1607, %v1608
          %v1610 = vsel %vm1537, %v1601, 0.0
          %v1611 = vadd.f32 %v1609, %v1610
          %v1612 = vsel %vm1537, %v1602, 0.0
          %v1613 = vadd.f32 %v1611, %v1612
          %v1614 = vsel %vm1537, %v1603, 0.0
          %v1615 = vadd.f32 %v1613, %v1614
          %v1616 = vsel %vm1537, %v1604, 0.0
          %v1617 = vadd.f32 %v1615, %v1616
          %v1618 = vsel %vm1537, %v1605, 0.0
          %v1619 = vadd.f32 %v1617, %v1618
          %v1620 = vsel %vm1537, %v1606, 0.0
          %v1621 = vadd.f32 %v1619, %v1620
          %1622 = vadd.xlane.f32.xlu0 %v1621
          %v1623 = vpop.xlane.xlu0 %1622
          %1624 = vst.msk [vmem:[%s540] sm:$0x3f] %vm1555, %v1623
        $region63: #{mixdcnn_forward.2} parent=50 // pred_fallthru
          _
        %p1625 = scmp.lt.s32.totalorder %s20, 3
        %s1626 = scalar_select %p1625, %s20, 3
        %s1627 = smul.addr %s1626, 8
        %s1628 = scalar_lea.vmem %s3, %s1627
        %p1629 = scmp.lt.s32.totalorder %s20, 3
        %s1630 = scalar_select %p1629, %s20, 3
        %s1631 = smul.addr %s1630, 8
        %s1632 = scalar_lea.vmem %s4, %s1631
        // Predicated region
        $region64: #{mixdcnn_forward.2} parent=50 // pred_check
          %p1633 = pneg %p126
        $region65: #{mixdcnn_forward.2} parent=50 // pred_check_branch
          %1635 = sbr.rel (%p1633) target = $region67
        $region66: #{mixdcnn_forward.2} parent=50 // pred_region
          _
        $region67: #{mixdcnn_forward.2} parent=50 // pred_fallthru
          _
        // Predicated region
        $region68: #{mixdcnn_forward.2} parent=50 // pred_check
          %p1636 = pneg %p152
        $region69: #{mixdcnn_forward.2} parent=50 // pred_check_branch
          %1638 = sbr.rel (%p1636) target = $region71
        $region70: #{mixdcnn_forward.2} parent=50 // pred_region
          _
        $region71: #{mixdcnn_forward.2} parent=50 // pred_fallthru
          _
      $region51: #{mixdcnn_forward.2} parent=5 // pred_fallthru
        _
      %p1639 = scmp.le.s32.totalorder 2, %s11
      // Predicated region
      $region72: #{mixdcnn_forward.2} parent=5 // pred_check
        %p1640 = pneg %p1639
      $region73: #{mixdcnn_forward.2} parent=5 // pred_check_branch
        %1642 = sbr.rel (%p1640) target = $region75
      $region74: #{mixdcnn_forward.2} parent=5 // pred_region
        %s1643 = ssub.s32 %s11, 2
        // Predicated region
        $region76: #{mixdcnn_forward.2} parent=74 // pred_check
          %p1644 = pneg %p132
        $region77: #{mixdcnn_forward.2} parent=74 // pred_check_branch
          %1646 = sbr.rel (%p1644) target = $region79
        $region78: #{mixdcnn_forward.2} parent=74 // pred_region
          %p1647 = scmp.lt.s32.totalorder %s22, 3
          %s1648 = scalar_select %p1647, %s22, 3
          %s1649 = smul.addr %s1648, 8
          %s1650 = scalar_lea.vmem %s3, %s1649
        $region79: #{mixdcnn_forward.2} parent=74 // pred_fallthru
          _
        // Predicated region
        $region80: #{mixdcnn_forward.2} parent=74 // pred_check
          %p1651 = pneg %p158
        $region81: #{mixdcnn_forward.2} parent=74 // pred_check_branch
          %1653 = sbr.rel (%p1651) target = $region83
        $region82: #{mixdcnn_forward.2} parent=74 // pred_region
          %p1654 = scmp.lt.s32.totalorder %s22, 3
          %s1655 = scalar_select %p1654, %s22, 3
          %s1656 = smul.addr %s1655, 8
          %s1657 = scalar_lea.vmem %s4, %s1656
        $region83: #{mixdcnn_forward.2} parent=74 // pred_fallthru
          _
      $region75: #{mixdcnn_forward.2} parent=5 // pred_fallthru
        _
    $region6: #{mixdcnn_forward.2} parent=1 // loop_footer
      %s15 = sadd.s32 1, %s11
    $region7: #{mixdcnn_forward.2} parent=1 // loop_footer_branch
      %10 = sbr.rel target = $region3
    $region8: #{mixdcnn_forward.2} parent=1 // loop_exit
      _

</llo_original>
